<compile_context>
chip_gen: v6e
topology: v6e:2x2x1
jax: 0.10.0
libtpu: 0.0.40
codegen_flags: <defaults>
</compile_context>

<pallas_src>
import functools
import numpy as np
import jax
import jax.numpy as jnp
from jax.experimental import pallas as pl
from jax.experimental.pallas import tpu as pltpu


def _sai_kernel(xp_ref, w_bd_ref, wog_bd_ref, scale2_ref, bias_ref, out_ref,
                *, Bblk, HW4, C, C8, C2):
    """Bblk batch elements per grid step.

    xp_ref     : (Bblk, HW4, 4*C) bf16   pool-window-grouped input
    w_bd_ref   : (4*C, 4*D) bf16         blockdiag([Wt|Wp|Wg], 4), D=2*C8+C2
    wog_bd_ref : (4*C2, 4*C) bf16        blockdiag(gamma*Wo*bn_scale, 4)
    scale2_ref : (1, 4*C) f32            2*bn_scale tiled over the 4 positions
    bias_ref   : (1, 4*C) f32            bn_bias (mean folded) tiled
    out_ref    : (Bblk, HW4, 4*C) f32    grouped output
    """
    D = 2 * C8 + C2

    # One fused bf16 projection matmul with batch folded into M.
    xpm = xp_ref[...].reshape(Bblk * HW4, 4 * C)                  # bf16
    proj = jnp.dot(xpm, w_bd_ref[...],
                   preferred_element_type=jnp.float32)            # (Bblk*HW4, 4D)

    wog_bd = wog_bd_ref[...]                                      # (4C2, 4C) bf16
    scale2 = scale2_ref[...]                                      # (1, 4C) f32
    bias = bias_ref[...]                                          # (1, 4C) f32

    for b in range(Bblk):
        pb = proj[b * HW4:(b + 1) * HW4]                          # (HW4, 4D) f32

        # 2x2 max-pool of the *projected* phi/g == max over the 4 per-position
        # projection column blocks (reference also projects first, pools after).
        phi_p = pb[:, C8:2 * C8]
        g_p = pb[:, 2 * C8:D]
        for k in range(1, 4):
            phi_p = jnp.maximum(phi_p, pb[:, k * D + C8:k * D + 2 * C8])
            g_p = jnp.maximum(g_p, pb[:, k * D + 2 * C8:(k + 1) * D])
        phi_p = phi_p.astype(jnp.bfloat16)                        # (HW4, C8)
        g_p = g_p.astype(jnp.bfloat16)                            # (HW4, C2)

        atts = []
        for k in range(4):
            theta_k = pb[:, k * D:k * D + C8].astype(jnp.bfloat16)
            # attention scores over pooled cells + stable softmax (deferred norm)
            s = jax.lax.dot_general(theta_k, phi_p, (((1,), (1,)), ((), ())),
                                    preferred_element_type=jnp.float32)  # (HW4,HW4)
            m = jnp.max(s, axis=-1, keepdims=True)
            p = jnp.exp(s - m)
            rs = jnp.sum(p, axis=-1, keepdims=True)
            att = jnp.dot(p.astype(jnp.bfloat16), g_p,
                          preferred_element_type=jnp.float32)     # (HW4, C2)
            atts.append(att * pl.reciprocal(rs, approx=True))

        # lane-stack the 4 attention outputs and do ONE output-conv matmul that
        # lands directly in the grouped (HW4, 4C) lane layout.
        att_cat = jnp.concatenate(atts, axis=-1).astype(jnp.bfloat16)   # (HW4,4C2)
        o_cat = jnp.dot(att_cat, wog_bd,
                        preferred_element_type=jnp.float32)             # (HW4,4C)

        # SAI: x + (gamma*o + x) = 2x + gamma*o, with eval-mode BN folded:
        #   out = (2*bn_scale)*x + (att @ (gamma*Wo*bn_scale)) + bn_bias
        x_b = xpm[b * HW4:(b + 1) * HW4].astype(jnp.float32)             # (HW4,4C)
        out_ref[b] = scale2 * x_b + o_cat + bias


def _blockdiag4(w):
    r, c = w.shape
    out = jnp.zeros((4 * r, 4 * c), w.dtype)
    for k in range(4):
        out = out.at[k * r:(k + 1) * r, k * c:(k + 1) * c].set(w)
    return out


def sai_pallas_grouped(xp, Wt, Wp, Wg, Wo, gamma, bn_scale, bn_bias, *,
                       bblk=None):
    """xp: (B, HW/4, 4*C) bf16 pool-window-grouped input; returns same layout f32."""
    B, HW4, C4 = xp.shape
    C = C4 // 4
    C8, C2 = Wt.shape[1], Wg.shape[1]
    D = 2 * C8 + C2

    if bblk is None:
        # keep >=2 grid steps when B>=2 (both v7x TensorCores busy); batch up
        # to 4 elements per step to amortize per-grid-step overhead.
        bblk = max(1, min(4, B // 2))
    while B % bblk:
        bblk -= 1

    w_all = jnp.concatenate([Wt, Wp, Wg], axis=1)                 # (C, D)
    w_bd = _blockdiag4(w_all).astype(jnp.bfloat16)                # (4C, 4D)
    wog = gamma * Wo * bn_scale[None, :]                          # gamma & BN fold
    wog_bd = _blockdiag4(wog).astype(jnp.bfloat16)                # (4C2, 4C)
    scale2 = jnp.tile((2.0 * bn_scale).reshape(1, C), (1, 4)).astype(jnp.float32)
    bias = jnp.tile(bn_bias.reshape(1, C), (1, 4)).astype(jnp.float32)

    kernel = functools.partial(_sai_kernel, Bblk=bblk, HW4=HW4, C=C, C8=C8, C2=C2)

    return pl.pallas_call(
        kernel,
        out_shape=jax.ShapeDtypeStruct((B, HW4, 4 * C), jnp.float32),
        grid_spec=pltpu.PrefetchScalarGridSpec(
            num_scalar_prefetch=0,
            grid=(B // bblk,),
            in_specs=[
                pl.BlockSpec((bblk, HW4, 4 * C), lambda b: (b, 0, 0)),
                pl.BlockSpec((4 * C, 4 * D), lambda b: (0, 0)),
                pl.BlockSpec((4 * C2, 4 * C), lambda b: (0, 0)),
                pl.BlockSpec((1, 4 * C), lambda b: (0, 0)),
                pl.BlockSpec((1, 4 * C), lambda b: (0, 0)),
            ],
            out_specs=pl.BlockSpec((bblk, HW4, 4 * C), lambda b: (b, 0, 0)),
        ),
        compiler_params=pltpu.CompilerParams(
            dimension_semantics=("parallel",)),
    )(xp, w_bd, wog_bd, scale2, bias)


def sai_pallas(x_nchw, Wt, Wp, Wg, Wo, gamma, bn_scale, bn_bias, *, bblk=None):
    """NCHW convenience wrapper (adds pack/unpack relayout passes outside the
    kernel; for bandwidth-critical use call sai_pallas_grouped directly)."""
    B, C, H, W = x_nchw.shape
    HW4 = (H * W) // 4

    x_nhwc = jnp.transpose(x_nchw, (0, 2, 3, 1))
    xp = (x_nhwc.reshape(B, H // 2, 2, W // 2, 2, C)
          .transpose(0, 1, 3, 2, 4, 5)
          .reshape(B, HW4, 4 * C)).astype(jnp.bfloat16)

    out_g = sai_pallas_grouped(xp, Wt, Wp, Wg, Wo, gamma, bn_scale, bn_bias,
                               bblk=bblk)

    # un-group (B, HW/4, 4C) -> NCHW
    out = (out_g.reshape(B, H // 2, W // 2, 2, 2, C)
           .transpose(0, 1, 3, 2, 4, 5)
           .reshape(B, H, W, C)
           .transpose(0, 3, 1, 2))
    return out


def sai_reference(x_nchw, Wt, Wp, Wg, Wo, gamma, bn_scale, bn_bias):
    """Pure-JAX reference mirroring the PyTorch forward (eval mode)."""
    B, C, H, W = x_nchw.shape
    x = jnp.transpose(x_nchw, (0, 2, 3, 1))                 # NHWC
    theta = jnp.einsum('bhwc,cd->bhwd', x, Wt)
    phi = jnp.einsum('bhwc,cd->bhwd', x, Wp)
    g = jnp.einsum('bhwc,cd->bhwd', x, Wg)

    def pool(y):
        return y.reshape(B, H // 2, 2, W // 2, 2, y.shape[-1]).max(axis=(2, 4))

    theta_f = theta.reshape(B, H * W, -1)
    phi_p = pool(phi).reshape(B, H * W // 4, -1)
    g_p = pool(g).reshape(B, H * W // 4, -1)
    s = jnp.einsum('bnd,bmd->bnm', theta_f, phi_p)
    beta = jax.nn.softmax(s, axis=-1)
    att = jnp.einsum('bnm,bmd->bnd', beta, g_p)
    o = jnp.einsum('bnd,dc->bnc', att, Wo)
    out = 2.0 * x.reshape(B, H * W, C) + gamma * o
    out = bn_scale.reshape(1, 1, C) * out + bn_bias.reshape(1, 1, C)
    return out.reshape(B, H, W, C).transpose(0, 3, 1, 2)


if __name__ == "__main__":
    B, C, H, W = 2, 16, 16, 16           # nf = 16 (divisible by 8)
    C8, C2 = C // 8, C // 2

    key = jax.random.PRNGKey(0)
    ks = jax.random.split(key, 10)
    x = jax.random.normal(ks[0], (B, C, H, W), jnp.float32)

    # 1x1 conv weights, channels-last (in, out) layout; spectral-norm scaling
    # is considered folded into these deterministic values.
    Wt = jax.random.normal(ks[1], (C, C8), jnp.float32) * 0.2
    Wp = jax.random.normal(ks[2], (C, C8), jnp.float32) * 0.2
    Wg = jax.random.normal(ks[3], (C, C2), jnp.float32) * 0.2
    Wo = jax.random.normal(ks[4], (C2, C), jnp.float32) * 0.2
    gamma = jnp.float32(0.5)             # nonzero so the attention path is exercised

    # eval-mode BatchNorm2d: fold (weight, bias, running_mean, running_var)
    bn_w = 1.0 + 0.1 * jax.random.normal(ks[5], (C,), jnp.float32)
    bn_b = 0.1 * jax.random.normal(ks[6], (C,), jnp.float32)
    run_mean = 0.1 * jax.random.normal(ks[7], (C,), jnp.float32)
    run_var = 1.0 + 0.1 * jnp.abs(jax.random.normal(ks[8], (C,), jnp.float32))
    eps = 1e-5
    bn_scale = bn_w / jnp.sqrt(run_var + eps)
    bn_bias = bn_b - run_mean * bn_scale

    out = sai_pallas(x, Wt, Wp, Wg, Wo, gamma, bn_scale, bn_bias)
    out = jax.block_until_ready(out)

    # The kernel stores x and the projection weights in bf16 and uses bf16 MXU
    # operands (f32 accumulation) for the score / attention / output-conv
    # matmuls; compare against the f32 reference on the same bf16-rounded
    # inputs with tolerance reflecting those bf16 operands.
    rnd = lambda a: a.astype(jnp.bfloat16).astype(jnp.float32)
    ref = sai_reference(rnd(x), rnd(Wt), rnd(Wp), rnd(Wg), Wo,
                        gamma, bn_scale, bn_bias)
    np.testing.assert_allclose(np.asarray(out), np.asarray(ref),
                               rtol=2e-2, atol=2.5e-2)
    print("KERNEL_OK")
</pallas_src>

<mosaic_0001>
module attributes {stable_mosaic.version = 11 : i64} {
  func.func @_sai_kernel(%arg0: i32, %arg1: memref<1x64x64xbf16, #tpu.memory_space<vmem>>, %arg2: memref<64x48xbf16, #tpu.memory_space<vmem>>, %arg3: memref<32x64xbf16, #tpu.memory_space<vmem>>, %arg4: memref<1x64xf32, #tpu.memory_space<vmem>>, %arg5: memref<1x64xf32, #tpu.memory_space<vmem>>, %arg6: memref<1x64x64xf32, #tpu.memory_space<vmem>>) attributes {dimension_semantics = [#tpu.dimension_semantics<parallel>], iteration_bounds = array<i64: 2>, scalar_prefetch = 0 : i64, scratch_operands = 0 : i64, tpu.core_type = #tpu.core_type<tc>, window_params = [{transform_indices = @transform_0, window_bounds = array<i64: 1, 64, 64>}, {pipeline_mode = #tpu.pipeline_mode<synchronous>, transform_indices = @transform_1, window_bounds = array<i64: 64, 48>}, {pipeline_mode = #tpu.pipeline_mode<synchronous>, transform_indices = @transform_2, window_bounds = array<i64: 32, 64>}, {pipeline_mode = #tpu.pipeline_mode<synchronous>, transform_indices = @transform_3, window_bounds = array<i64: 1, 64>}, {pipeline_mode = #tpu.pipeline_mode<synchronous>, transform_indices = @transform_4, window_bounds = array<i64: 1, 64>}, {transform_indices = @transform_5, window_bounds = array<i64: 1, 64, 64>}]} {
    %c0 = arith.constant 0 : index
    %c0_0 = arith.constant 0 : index
    %c0_1 = arith.constant 0 : index
    %0 = vector.load %arg1[%c0, %c0_0, %c0_1] : memref<1x64x64xbf16, #tpu.memory_space<vmem>>, vector<1x64x64xbf16>
    %1 = vector.shape_cast %0 : vector<1x64x64xbf16> to vector<64x64xbf16>
    %c0_2 = arith.constant 0 : index
    %c0_3 = arith.constant 0 : index
    %2 = vector.load %arg2[%c0_2, %c0_3] : memref<64x48xbf16, #tpu.memory_space<vmem>>, vector<64x48xbf16>
    %cst = arith.constant dense<0.000000e+00> : vector<64x48xf32>
    %3 = tpu.matmul %1, %2, %cst {dimension_numbers = #tpu.dot_dimension_numbers<[1], [0], [0], [1], [0, 0, 1, 1], [], []>} : vector<64x64xbf16>, vector<64x48xbf16>, vector<64x48xf32> -> vector<64x48xf32>
    %c0_4 = arith.constant 0 : index
    %c0_5 = arith.constant 0 : index
    %4 = vector.load %arg3[%c0_4, %c0_5] : memref<32x64xbf16, #tpu.memory_space<vmem>>, vector<32x64xbf16>
    %c0_6 = arith.constant 0 : index
    %c0_7 = arith.constant 0 : index
    %5 = vector.load %arg4[%c0_6, %c0_7] : memref<1x64xf32, #tpu.memory_space<vmem>>, vector<1x64xf32>
    %c0_8 = arith.constant 0 : index
    %c0_9 = arith.constant 0 : index
    %6 = vector.load %arg5[%c0_8, %c0_9] : memref<1x64xf32, #tpu.memory_space<vmem>>, vector<1x64xf32>
    %7 = vector.extract_strided_slice %3 {offsets = [0, 2], sizes = [64, 2], strides = [1, 1]} : vector<64x48xf32> to vector<64x2xf32>
    %8 = vector.extract_strided_slice %3 {offsets = [0, 4], sizes = [64, 8], strides = [1, 1]} : vector<64x48xf32> to vector<64x8xf32>
    %9 = vector.extract_strided_slice %3 {offsets = [0, 14], sizes = [64, 2], strides = [1, 1]} : vector<64x48xf32> to vector<64x2xf32>
    %10 = arith.maximumf %7, %9 : vector<64x2xf32>
    %11 = vector.extract_strided_slice %3 {offsets = [0, 16], sizes = [64, 8], strides = [1, 1]} : vector<64x48xf32> to vector<64x8xf32>
    %12 = arith.maximumf %8, %11 : vector<64x8xf32>
    %13 = vector.extract_strided_slice %3 {offsets = [0, 26], sizes = [64, 2], strides = [1, 1]} : vector<64x48xf32> to vector<64x2xf32>
    %14 = arith.maximumf %10, %13 : vector<64x2xf32>
    %15 = vector.extract_strided_slice %3 {offsets = [0, 28], sizes = [64, 8], strides = [1, 1]} : vector<64x48xf32> to vector<64x8xf32>
    %16 = arith.maximumf %12, %15 : vector<64x8xf32>
    %17 = vector.extract_strided_slice %3 {offsets = [0, 38], sizes = [64, 2], strides = [1, 1]} : vector<64x48xf32> to vector<64x2xf32>
    %18 = arith.maximumf %14, %17 : vector<64x2xf32>
    %19 = vector.extract_strided_slice %3 {offsets = [0, 40], sizes = [64, 8], strides = [1, 1]} : vector<64x48xf32> to vector<64x8xf32>
    %20 = arith.maximumf %16, %19 : vector<64x8xf32>
    %21 = arith.truncf %18 : vector<64x2xf32> to vector<64x2xbf16>
    %22 = arith.truncf %20 : vector<64x8xf32> to vector<64x8xbf16>
    %23 = vector.extract_strided_slice %3 {offsets = [0, 0], sizes = [64, 2], strides = [1, 1]} : vector<64x48xf32> to vector<64x2xf32>
    %24 = arith.truncf %23 : vector<64x2xf32> to vector<64x2xbf16>
    %cst_10 = arith.constant dense<0.000000e+00> : vector<64x64xf32>
    %25 = tpu.matmul %24, %21, %cst_10 {dimension_numbers = #tpu.dot_dimension_numbers<[1], [1], [0], [0], [0, 0, 1, 0], [], []>} : vector<64x2xbf16>, vector<64x2xbf16>, vector<64x64xf32> -> vector<64x64xf32>
    %cst_11 = arith.constant dense<0xFF800000> : vector<64xf32>
    %26 = vector.multi_reduction <maximumf>, %25, %cst_11 [1] : vector<64x64xf32> to vector<64xf32>
    %27 = vector.shape_cast %26 : vector<64xf32> to vector<64x1xf32>
    %28 = vector.broadcast %27 : vector<64x1xf32> to vector<64x64xf32>
    %29 = arith.subf %25, %28 : vector<64x64xf32>
    %30 = math.exp %29 : vector<64x64xf32>
    %cst_12 = arith.constant dense<0.000000e+00> : vector<64xf32>
    %31 = vector.multi_reduction <add>, %30, %cst_12 [1] : vector<64x64xf32> to vector<64xf32>
    %32 = vector.shape_cast %31 : vector<64xf32> to vector<64x1xf32>
    %33 = arith.truncf %30 : vector<64x64xf32> to vector<64x64xbf16>
    %cst_13 = arith.constant dense<0.000000e+00> : vector<64x8xf32>
    %34 = tpu.matmul %33, %22, %cst_13 {dimension_numbers = #tpu.dot_dimension_numbers<[1], [0], [0], [1], [0, 0, 1, 1], [], []>} : vector<64x64xbf16>, vector<64x8xbf16>, vector<64x8xf32> -> vector<64x8xf32>
    %35 = tpu.reciprocal %32 {approx = true} : vector<64x1xf32> -> vector<64x1xf32>
    %36 = vector.broadcast %35 : vector<64x1xf32> to vector<64x8xf32>
    %37 = arith.mulf %34, %36 : vector<64x8xf32>
    %38 = vector.extract_strided_slice %3 {offsets = [0, 12], sizes = [64, 2], strides = [1, 1]} : vector<64x48xf32> to vector<64x2xf32>
    %39 = arith.truncf %38 : vector<64x2xf32> to vector<64x2xbf16>
    %cst_14 = arith.constant dense<0.000000e+00> : vector<64x64xf32>
    %40 = tpu.matmul %39, %21, %cst_14 {dimension_numbers = #tpu.dot_dimension_numbers<[1], [1], [0], [0], [0, 0, 1, 0], [], []>} : vector<64x2xbf16>, vector<64x2xbf16>, vector<64x64xf32> -> vector<64x64xf32>
    %cst_15 = arith.constant dense<0xFF800000> : vector<64xf32>
    %41 = vector.multi_reduction <maximumf>, %40, %cst_15 [1] : vector<64x64xf32> to vector<64xf32>
    %42 = vector.shape_cast %41 : vector<64xf32> to vector<64x1xf32>
    %43 = vector.broadcast %42 : vector<64x1xf32> to vector<64x64xf32>
    %44 = arith.subf %40, %43 : vector<64x64xf32>
    %45 = math.exp %44 : vector<64x64xf32>
    %cst_16 = arith.constant dense<0.000000e+00> : vector<64xf32>
    %46 = vector.multi_reduction <add>, %45, %cst_16 [1] : vector<64x64xf32> to vector<64xf32>
    %47 = vector.shape_cast %46 : vector<64xf32> to vector<64x1xf32>
    %48 = arith.truncf %45 : vector<64x64xf32> to vector<64x64xbf16>
    %cst_17 = arith.constant dense<0.000000e+00> : vector<64x8xf32>
    %49 = tpu.matmul %48, %22, %cst_17 {dimension_numbers = #tpu.dot_dimension_numbers<[1], [0], [0], [1], [0, 0, 1, 1], [], []>} : vector<64x64xbf16>, vector<64x8xbf16>, vector<64x8xf32> -> vector<64x8xf32>
    %50 = tpu.reciprocal %47 {approx = true} : vector<64x1xf32> -> vector<64x1xf32>
    %51 = vector.broadcast %50 : vector<64x1xf32> to vector<64x8xf32>
    %52 = arith.mulf %49, %51 : vector<64x8xf32>
    %53 = vector.extract_strided_slice %3 {offsets = [0, 24], sizes = [64, 2], strides = [1, 1]} : vector<64x48xf32> to vector<64x2xf32>
    %54 = arith.truncf %53 : vector<64x2xf32> to vector<64x2xbf16>
    %cst_18 = arith.constant dense<0.000000e+00> : vector<64x64xf32>
    %55 = tpu.matmul %54, %21, %cst_18 {dimension_numbers = #tpu.dot_dimension_numbers<[1], [1], [0], [0], [0, 0, 1, 0], [], []>} : vector<64x2xbf16>, vector<64x2xbf16>, vector<64x64xf32> -> vector<64x64xf32>
    %cst_19 = arith.constant dense<0xFF800000> : vector<64xf32>
    %56 = vector.multi_reduction <maximumf>, %55, %cst_19 [1] : vector<64x64xf32> to vector<64xf32>
    %57 = vector.shape_cast %56 : vector<64xf32> to vector<64x1xf32>
    %58 = vector.broadcast %57 : vector<64x1xf32> to vector<64x64xf32>
    %59 = arith.subf %55, %58 : vector<64x64xf32>
    %60 = math.exp %59 : vector<64x64xf32>
    %cst_20 = arith.constant dense<0.000000e+00> : vector<64xf32>
    %61 = vector.multi_reduction <add>, %60, %cst_20 [1] : vector<64x64xf32> to vector<64xf32>
    %62 = vector.shape_cast %61 : vector<64xf32> to vector<64x1xf32>
    %63 = arith.truncf %60 : vector<64x64xf32> to vector<64x64xbf16>
    %cst_21 = arith.constant dense<0.000000e+00> : vector<64x8xf32>
    %64 = tpu.matmul %63, %22, %cst_21 {dimension_numbers = #tpu.dot_dimension_numbers<[1], [0], [0], [1], [0, 0, 1, 1], [], []>} : vector<64x64xbf16>, vector<64x8xbf16>, vector<64x8xf32> -> vector<64x8xf32>
    %65 = tpu.reciprocal %62 {approx = true} : vector<64x1xf32> -> vector<64x1xf32>
    %66 = vector.broadcast %65 : vector<64x1xf32> to vector<64x8xf32>
    %67 = arith.mulf %64, %66 : vector<64x8xf32>
    %68 = vector.extract_strided_slice %3 {offsets = [0, 36], sizes = [64, 2], strides = [1, 1]} : vector<64x48xf32> to vector<64x2xf32>
    %69 = arith.truncf %68 : vector<64x2xf32> to vector<64x2xbf16>
    %cst_22 = arith.constant dense<0.000000e+00> : vector<64x64xf32>
    %70 = tpu.matmul %69, %21, %cst_22 {dimension_numbers = #tpu.dot_dimension_numbers<[1], [1], [0], [0], [0, 0, 1, 0], [], []>} : vector<64x2xbf16>, vector<64x2xbf16>, vector<64x64xf32> -> vector<64x64xf32>
    %cst_23 = arith.constant dense<0xFF800000> : vector<64xf32>
    %71 = vector.multi_reduction <maximumf>, %70, %cst_23 [1] : vector<64x64xf32> to vector<64xf32>
    %72 = vector.shape_cast %71 : vector<64xf32> to vector<64x1xf32>
    %73 = vector.broadcast %72 : vector<64x1xf32> to vector<64x64xf32>
    %74 = arith.subf %70, %73 : vector<64x64xf32>
    %75 = math.exp %74 : vector<64x64xf32>
    %cst_24 = arith.constant dense<0.000000e+00> : vector<64xf32>
    %76 = vector.multi_reduction <add>, %75, %cst_24 [1] : vector<64x64xf32> to vector<64xf32>
    %77 = vector.shape_cast %76 : vector<64xf32> to vector<64x1xf32>
    %78 = arith.truncf %75 : vector<64x64xf32> to vector<64x64xbf16>
    %cst_25 = arith.constant dense<0.000000e+00> : vector<64x8xf32>
    %79 = tpu.matmul %78, %22, %cst_25 {dimension_numbers = #tpu.dot_dimension_numbers<[1], [0], [0], [1], [0, 0, 1, 1], [], []>} : vector<64x64xbf16>, vector<64x8xbf16>, vector<64x8xf32> -> vector<64x8xf32>
    %80 = tpu.reciprocal %77 {approx = true} : vector<64x1xf32> -> vector<64x1xf32>
    %81 = vector.broadcast %80 : vector<64x1xf32> to vector<64x8xf32>
    %82 = arith.mulf %79, %81 : vector<64x8xf32>
    %83 = tpu.concatenate %37, %52, %67, %82 in 1 : vector<64x8xf32>, vector<64x8xf32>, vector<64x8xf32>, vector<64x8xf32> -> vector<64x32xf32>
    %84 = arith.truncf %83 : vector<64x32xf32> to vector<64x32xbf16>
    %cst_26 = arith.constant dense<0.000000e+00> : vector<64x64xf32>
    %85 = tpu.matmul %84, %4, %cst_26 {dimension_numbers = #tpu.dot_dimension_numbers<[1], [0], [0], [1], [0, 0, 1, 1], [], []>} : vector<64x32xbf16>, vector<32x64xbf16>, vector<64x64xf32> -> vector<64x64xf32>
    %86 = arith.extf %1 : vector<64x64xbf16> to vector<64x64xf32>
    %87 = vector.broadcast %5 : vector<1x64xf32> to vector<64x64xf32>
    %88 = arith.mulf %87, %86 : vector<64x64xf32>
    %89 = arith.addf %88, %85 : vector<64x64xf32>
    %90 = vector.broadcast %6 : vector<1x64xf32> to vector<64x64xf32>
    %91 = arith.addf %89, %90 : vector<64x64xf32>
    %c0_27 = arith.constant 0 : index
    %c0_28 = arith.constant 0 : index
    %c0_29 = arith.constant 0 : index
    %92 = vector.load %arg6[%c0_27, %c0_28, %c0_29] : memref<1x64x64xf32, #tpu.memory_space<vmem>>, vector<1x64x64xf32>
    %93 = vector.shape_cast %92 : vector<1x64x64xf32> to vector<64x64xf32>
    %94 = vector.shape_cast %91 : vector<64x64xf32> to vector<1x64x64xf32>
    tpu.vector_store %arg6[%c0_27, %c0_28, %c0_29], %94 {strides = array<i32>} : memref<1x64x64xf32, #tpu.memory_space<vmem>>, vector<1x64x64xf32>,
    return
  }
  func.func @transform_0(%arg0: i32) -> (i32, i32, i32) {
    %c0_i32 = arith.constant 0 : i32
    %c0_i32_0 = arith.constant 0 : i32
    %c0_i32_1 = arith.constant 0 : i32
    return %arg0, %c0_i32, %c0_i32_0 : i32, i32, i32
  }
  func.func @transform_1(%arg0: i32) -> (i32, i32) {
    %c0_i32 = arith.constant 0 : i32
    %c0_i32_0 = arith.constant 0 : i32
    %c0_i32_1 = arith.constant 0 : i32
    return %c0_i32, %c0_i32_0 : i32, i32
  }
  func.func @transform_2(%arg0: i32) -> (i32, i32) {
    %c0_i32 = arith.constant 0 : i32
    %c0_i32_0 = arith.constant 0 : i32
    %c0_i32_1 = arith.constant 0 : i32
    return %c0_i32, %c0_i32_0 : i32, i32
  }
  func.func @transform_3(%arg0: i32) -> (i32, i32) {
    %c0_i32 = arith.constant 0 : i32
    %c0_i32_0 = arith.constant 0 : i32
    %c0_i32_1 = arith.constant 0 : i32
    return %c0_i32, %c0_i32_0 : i32, i32
  }
  func.func @transform_4(%arg0: i32) -> (i32, i32) {
    %c0_i32 = arith.constant 0 : i32
    %c0_i32_0 = arith.constant 0 : i32
    %c0_i32_1 = arith.constant 0 : i32
    return %c0_i32, %c0_i32_0 : i32, i32
  }
  func.func @transform_5(%arg0: i32) -> (i32, i32, i32) {
    %c0_i32 = arith.constant 0 : i32
    %c0_i32_0 = arith.constant 0 : i32
    %c0_i32_1 = arith.constant 0 : i32
    return %arg0, %c0_i32, %c0_i32_0 : i32, i32, i32
  }
}

</mosaic_0001>

<llo_original>
// kernel: tpu_custom_call.1
$region0: #{tpu_custom_call.1}
  #allocation0 [shape = 'u32[]', space=smem, size = 0x4, offset = 0x4, fixed_abs, tag = 'smem constant byte address 0x4 - core index']
  #allocation1 [shape = 'u32[144,128]{1,0:T(1,128)}', space=vmem, size = 0x12000, scoped, tag = 'internal scratch']
  %s0 = inlined_call_operand.hbm [shape: bf16[2,64,64], index: 0, kind: input, shape index: {}]
  %s1 = inlined_call_operand.vmem [shape: bf16[64,48], index: 1, kind: input, shape index: {}]
  %s2 = inlined_call_operand.vmem [shape: bf16[32,64], index: 2, kind: input, shape index: {}]
  %s3 = inlined_call_operand.vmem [shape: f32[1,64], index: 3, kind: input, shape index: {}]
  %s4 = inlined_call_operand.vmem [shape: f32[1,64], index: 4, kind: input, shape index: {}]
  %s5 = inlined_call_operand.hbm [shape: f32[2,64,64], index: 5, kind: output, shape index: {}]
  %s6 = sld [smem:[#allocation0]]
  $region57: #{tpu_custom_call.1} parent=0
    _
  %s8 = ssub.s32 1, %s6
  %s9 = scalar_select 0, %s8, %s6
  $region1: #{tpu_custom_call.1} parent=0
    #allocation2 [shape = 'u8[32768]{0}', space=vmem, size = 0x8000, scoped, tag = 'input window, operand 0']
    #allocation3 [shape = 's32[2]{0}', space=sflag, size = 0x8, scoped, tag = 'scoped memory for tpu_custom_call.1']
    #allocation4 [shape = 's32[2]{0}', space=sflag, size = 0x8, scoped, tag = 'scoped memory for tpu_custom_call.1']
    #allocation5 [shape = 'u8[65536]{0}', space=vmem, size = 0x10000, scoped, tag = 'output window, operand 0']
    %10 = vsyncpa [#allocation3], 0
    %s11 = scalar_lea.sflag [#allocation3], 1
    %12 = vsyncpa %s11, 0
    %13 = vsyncpa [#allocation4], 0
    %s14 = scalar_lea.sflag [#allocation4], 1
    %15 = vsyncpa %s14, 0
    loop: start=0, step=1, limit=4
    $region2: #{tpu_custom_call.1} parent=1 // loop_pre_header
      _
    $region3: #{tpu_custom_call.1} parent=1 // loop_header
      %s17 = sphi 0, %s21
      %p18 = scmp.ge.s32.totalorder %s17, 4
      %s27 = sphi 0, %s29
      %s30 = sphi 0, %s27
      %s31 = sphi 0, %s30
      %s47 = sphi 0, %s31
      %s51 = sphi 0, %s51
      %s53 = sphi 0, %s51
      %s54 = sphi 0, %s53
      %s68 = sphi 0, %s54
      %s72 = sphi 0, %s72
      %s74 = sphi 0, %s72
      %s75 = sphi 0, %s74
      %s89 = sphi 0, %s75
      %s93 = sphi 0, %s93
      %s95 = sphi 0, %s93
      %s96 = sphi 0, %s95
      %s110 = sphi 0, %s96
      %s114 = sphi 0, %s114
      %s116 = sphi 0, %s114
      %s117 = sphi 0, %s116
      %s131 = sphi 0, %s117
      %s137 = sphi 0, %s139
      %s140 = sphi 0, %s137
      %s141 = sphi 0, %s140
      %s157 = sphi 0, %s141
    $region4: #{tpu_custom_call.1} parent=1 // loop_header_branch
      %20 = sbr.rel (%p18) target = $region8
    $region5: #{tpu_custom_call.1} parent=1 // loop_body
      %s22 = ssub.s32 %s17, 1
      %s23 = ssub.s32 %s17, 2
      %s24 = sadd.s32 %s17, 1
      %s25 = ssub.s32 %s17, %s24
      %p26 = scmp.eq.s32.totalorder %s25, 0
      %s28 = sadd.s32 %s27, 1
      %s29 = scalar_select %p26, %s27, %s28
      %p32 = pneg %p26
      %p33 = scmp.eq.s32.totalorder %s17, 1
      %p34 = por %p32, %p33
      %p35 = scmp.ne.s32.totalorder %s27, %s30
      %p36 = scmp.eq.s32.totalorder %s17, 0
      %p37 = por %p35, %p36
      %p38 = scmp.ne.s32.totalorder %s27, %s30
      %p39 = scmp.eq.s32.totalorder %s22, 1
      %p40 = por %p38, %p39
      %p41 = scmp.ne.s32.totalorder %s30, %s31
      %p42 = scmp.eq.s32.totalorder %s22, 0
      %p43 = por %p41, %p42
      %p44 = scmp.ne.s32.totalorder %s30, %s31
      %p45 = scmp.eq.s32.totalorder %s23, 1
      %p46 = por %p44, %p45
      %p48 = scmp.ne.s32.totalorder %s31, %s47
      %p49 = scmp.eq.s32.totalorder %s23, 0
      %p50 = por %p48, %p49
      %s52 = sadd.s32 %s51, 1
      %p55 = scmp.eq.s32.totalorder %s17, 1
      %p56 = scmp.ne.s32.totalorder %s51, %s53
      %p57 = scmp.eq.s32.totalorder %s17, 0
      %p58 = por %p56, %p57
      %p59 = scmp.ne.s32.totalorder %s51, %s53
      %p60 = scmp.eq.s32.totalorder %s22, 1
      %p61 = por %p59, %p60
      %p62 = scmp.ne.s32.totalorder %s53, %s54
      %p63 = scmp.eq.s32.totalorder %s22, 0
      %p64 = por %p62, %p63
      %p65 = scmp.ne.s32.totalorder %s53, %s54
      %p66 = scmp.eq.s32.totalorder %s23, 1
      %p67 = por %p65, %p66
      %p69 = scmp.ne.s32.totalorder %s54, %s68
      %p70 = scmp.eq.s32.totalorder %s23, 0
      %p71 = por %p69, %p70
      %s73 = sadd.s32 %s72, 1
      %p76 = scmp.eq.s32.totalorder %s17, 1
      %p77 = scmp.ne.s32.totalorder %s72, %s74
      %p78 = scmp.eq.s32.totalorder %s17, 0
      %p79 = por %p77, %p78
      %p80 = scmp.ne.s32.totalorder %s72, %s74
      %p81 = scmp.eq.s32.totalorder %s22, 1
      %p82 = por %p80, %p81
      %p83 = scmp.ne.s32.totalorder %s74, %s75
      %p84 = scmp.eq.s32.totalorder %s22, 0
      %p85 = por %p83, %p84
      %p86 = scmp.ne.s32.totalorder %s74, %s75
      %p87 = scmp.eq.s32.totalorder %s23, 1
      %p88 = por %p86, %p87
      %p90 = scmp.ne.s32.totalorder %s75, %s89
      %p91 = scmp.eq.s32.totalorder %s23, 0
      %p92 = por %p90, %p91
      %s94 = sadd.s32 %s93, 1
      %p97 = scmp.eq.s32.totalorder %s17, 1
      %p98 = scmp.ne.s32.totalorder %s93, %s95
      %p99 = scmp.eq.s32.totalorder %s17, 0
      %p100 = por %p98, %p99
      %p101 = scmp.ne.s32.totalorder %s93, %s95
      %p102 = scmp.eq.s32.totalorder %s22, 1
      %p103 = por %p101, %p102
      %p104 = scmp.ne.s32.totalorder %s95, %s96
      %p105 = scmp.eq.s32.totalorder %s22, 0
      %p106 = por %p104, %p105
      %p107 = scmp.ne.s32.totalorder %s95, %s96
      %p108 = scmp.eq.s32.totalorder %s23, 1
      %p109 = por %p107, %p108
      %p111 = scmp.ne.s32.totalorder %s96, %s110
      %p112 = scmp.eq.s32.totalorder %s23, 0
      %p113 = por %p111, %p112
      %s115 = sadd.s32 %s114, 1
      %p118 = scmp.eq.s32.totalorder %s17, 1
      %p119 = scmp.ne.s32.totalorder %s114, %s116
      %p120 = scmp.eq.s32.totalorder %s17, 0
      %p121 = por %p119, %p120
      %p122 = scmp.ne.s32.totalorder %s114, %s116
      %p123 = scmp.eq.s32.totalorder %s22, 1
      %p124 = por %p122, %p123
      %p125 = scmp.ne.s32.totalorder %s116, %s117
      %p126 = scmp.eq.s32.totalorder %s22, 0
      %p127 = por %p125, %p126
      %p128 = scmp.ne.s32.totalorder %s116, %s117
      %p129 = scmp.eq.s32.totalorder %s23, 1
      %p130 = por %p128, %p129
      %p132 = scmp.ne.s32.totalorder %s117, %s131
      %p133 = scmp.eq.s32.totalorder %s23, 0
      %p134 = por %p132, %p133
      %s135 = ssub.s32 %s17, %s24
      %p136 = scmp.eq.s32.totalorder %s135, 0
      %s138 = sadd.s32 %s137, 1
      %s139 = scalar_select %p136, %s137, %s138
      %p142 = pneg %p136
      %p143 = scmp.eq.s32.totalorder %s17, 1
      %p144 = por %p142, %p143
      %p145 = scmp.ne.s32.totalorder %s137, %s140
      %p146 = scmp.eq.s32.totalorder %s17, 0
      %p147 = por %p145, %p146
      %p148 = scmp.ne.s32.totalorder %s137, %s140
      %p149 = scmp.eq.s32.totalorder %s22, 1
      %p150 = por %p148, %p149
      %p151 = scmp.ne.s32.totalorder %s140, %s141
      %p152 = scmp.eq.s32.totalorder %s22, 0
      %p153 = por %p151, %p152
      %p154 = scmp.ne.s32.totalorder %s140, %s141
      %p155 = scmp.eq.s32.totalorder %s23, 1
      %p156 = por %p154, %p155
      %p158 = scmp.ne.s32.totalorder %s141, %s157
      %p159 = scmp.eq.s32.totalorder %s23, 0
      %p160 = por %p158, %p159
      %p161 = scmp.le.s32.totalorder 1, %s17
      %p162 = scmp.lt.s32.totalorder %s17, 3
      %p163 = pnand %p161, %p162
      %p164 = pneg %p163
      // Predicated region
      $region9: #{tpu_custom_call.1} parent=5 // pred_check
        _
      $region10: #{tpu_custom_call.1} parent=5 // pred_check_branch
        %166 = sbr.rel (%p163) target = $region12
      $region11: #{tpu_custom_call.1} parent=5 // pred_region
        %s167 = ssub.s32 %s17, 1
        // Predicated region
        $region13: #{tpu_custom_call.1} parent=11 // pred_check
          %p168 = pneg %p64
        $region14: #{tpu_custom_call.1} parent=11 // pred_check_branch
          %170 = sbr.rel (%p168) target = $region16
        $region15: #{tpu_custom_call.1} parent=11 // pred_region
          _
        $region16: #{tpu_custom_call.1} parent=11 // pred_fallthru
          _
        // Predicated region
        $region17: #{tpu_custom_call.1} parent=11 // pred_check
          %p171 = pneg %p85
        $region18: #{tpu_custom_call.1} parent=11 // pred_check_branch
          %173 = sbr.rel (%p171) target = $region20
        $region19: #{tpu_custom_call.1} parent=11 // pred_region
          _
        $region20: #{tpu_custom_call.1} parent=11 // pred_fallthru
          _
        // Predicated region
        $region21: #{tpu_custom_call.1} parent=11 // pred_check
          %p174 = pneg %p106
        $region22: #{tpu_custom_call.1} parent=11 // pred_check_branch
          %176 = sbr.rel (%p174) target = $region24
        $region23: #{tpu_custom_call.1} parent=11 // pred_region
          _
        $region24: #{tpu_custom_call.1} parent=11 // pred_fallthru
          _
        // Predicated region
        $region25: #{tpu_custom_call.1} parent=11 // pred_check
          %p177 = pneg %p127
        $region26: #{tpu_custom_call.1} parent=11 // pred_check_branch
          %179 = sbr.rel (%p177) target = $region28
        $region27: #{tpu_custom_call.1} parent=11 // pred_region
          _
        $region28: #{tpu_custom_call.1} parent=11 // pred_fallthru
          _
      $region12: #{tpu_custom_call.1} parent=5 // pred_fallthru
        _
      %p180 = scmp.lt.s32.totalorder %s17, 2
      // Predicated region
      $region29: #{tpu_custom_call.1} parent=5 // pred_check
        %p181 = pneg %p180
      $region30: #{tpu_custom_call.1} parent=5 // pred_check_branch
        %183 = sbr.rel (%p181) target = $region32
      $region31: #{tpu_custom_call.1} parent=5 // pred_region
        // Predicated region
        $region33: #{tpu_custom_call.1} parent=31 // pred_check
          %p184 = pneg %p37
        $region34: #{tpu_custom_call.1} parent=31 // pred_check_branch
          %186 = sbr.rel (%p184) target = $region36
        $region35: #{tpu_custom_call.1} parent=31 // pred_region
          %s187 = sand.u32 %s27, 1
          %s188 = scalar_lea.sflag [#allocation3], %s187
          %s189 = sand.u32 %s27, 1
          %s190 = smul.addr %s189, 32
          %s191 = scalar_lea.vmem [#allocation2], %s190
          %s193 = ssub.s32 512, 512
          %194 = vsyncadd %s188, %s193
          %s195 = smul.addr %s17, 8
          %s196 = smul.addr %s195, 64
          %s197 = scalar_lea.hbm %s0, %s196
          %s198 = sshll.u32 %s191, 4
          %s199 = int_to_ptr.vmem [resolvable:$true] %s198
          %204 = dma.hbm_to_vmem [thread:$0]  %s197, 512, %s199, %s188, 64, 64, 4
        $region36: #{tpu_custom_call.1} parent=31 // pred_fallthru
          _
      $region32: #{tpu_custom_call.1} parent=5 // pred_fallthru
        _
      %p205 = scmp.le.s32.totalorder 1, %s17
      %p206 = scmp.lt.s32.totalorder %s17, 3
      %p207 = pnand %p205, %p206
      %p208 = pneg %p207
      // Predicated region
      $region37: #{tpu_custom_call.1} parent=5 // pred_check
        _
      $region38: #{tpu_custom_call.1} parent=5 // pred_check_branch
        %210 = sbr.rel (%p207) target = $region40
      $region39: #{tpu_custom_call.1} parent=5 // pred_region
        %s211 = ssub.s32 %s17, 1
        %s212 = sand.u32 %s30, 1
        %s213 = scalar_lea.sflag [#allocation3], %s212
        %s214 = sand.u32 %s30, 1
        %s215 = smul.addr %s214, 32
        %s216 = scalar_lea.vmem [#allocation2], %s215
        // Predicated region
        $region41: #{tpu_custom_call.1} parent=39 // pred_check
          %p217 = pneg %p43
        $region42: #{tpu_custom_call.1} parent=39 // pred_check_branch
          %219 = sbr.rel (%p217) target = $region44
        $region43: #{tpu_custom_call.1} parent=39 // pred_region
          %220 = dma.done %s213, 512
        $region44: #{tpu_custom_call.1} parent=39 // pred_fallthru
          _
        %s221 = sand.u32 %s30, 1
        %s222 = scalar_lea.sflag [#allocation3], %s221
        %s223 = sand.u32 %s30, 1
        %s224 = smul.addr %s223, 32
        %s225 = scalar_lea.vmem [#allocation2], %s224
        %p226 = pneg %p43
        %p227 = pneg %p40
        %p228 = pneg %p64
        %p229 = pneg %p61
        %p230 = pneg %p85
        %p231 = pneg %p82
        %p232 = pneg %p106
        %p233 = pneg %p103
        %p234 = pneg %p127
        %p235 = pneg %p124
        %p236 = pneg %p153
        %p237 = pneg %p150
        %s238 = sand.u32 %s140, 1
        %s239 = scalar_lea.sflag [#allocation4], %s238
        %s240 = sand.u32 %s140, 1
        %s241 = smul.addr %s240, 64
        %s242 = scalar_lea.vmem [#allocation5], %s241
        %v244 = vld [vmem:[%s216] sm:$0xf]
        %v245 = vld [vmem:[%s216 + $0x4] sm:$0xf]
        %v246 = vld [vmem:[%s216 + $0x8] sm:$0xf]
        %v247 = vld [vmem:[%s216 + $0xc] sm:$0xf]
        %v248 = vld [vmem:[%s216 + $0x10] sm:$0xf]
        %v249 = vld [vmem:[%s216 + $0x14] sm:$0xf]
        %v250 = vld [vmem:[%s216 + $0x18] sm:$0xf]
        %v251 = vld [vmem:[%s216 + $0x1c] sm:$0xf]
        %v252 = vld [vmem:[%s1] sm:$0xf]
        %v253 = vld [vmem:[%s1 + $0x4] sm:$0xf]
        %v254 = vld [vmem:[%s1 + $0x8] sm:$0xf]
        %v255 = vld [vmem:[%s1 + $0xc] sm:$0xf]
        %v256 = vld [vmem:[%s1 + $0x10] sm:$0xf]
        %v257 = vld [vmem:[%s1 + $0x14] sm:$0xf]
        %v258 = vld [vmem:[%s1 + $0x18] sm:$0xf]
        %v259 = vld [vmem:[%s1 + $0x1c] sm:$0xf]
        %v268 = vunpack.c.l.b16 %v244
        %v269 = vunpack.c.l.b16 %v245
        %v270 = vunpack.c.l.b16 %v246
        %v271 = vunpack.c.l.b16 %v247
        %v272 = vunpack.c.l.b16 %v248
        %v273 = vunpack.c.l.b16 %v249
        %v274 = vunpack.c.l.b16 %v250
        %v275 = vunpack.c.l.b16 %v251
        %v276 = vpack.c.b16 %v269, %v268
        %v277 = vpack.c.b16 %v271, %v270
        %v278 = vpack.c.b16 %v273, %v272
        %v279 = vpack.c.b16 %v275, %v274
        %v288 = vunpack.c.l.b16 %v252
        %v289 = vunpack.c.l.b16 %v253
        %v290 = vunpack.c.l.b16 %v254
        %v291 = vunpack.c.l.b16 %v255
        %v292 = vunpack.c.l.b16 %v256
        %v293 = vunpack.c.l.b16 %v257
        %v294 = vunpack.c.l.b16 %v258
        %v295 = vunpack.c.l.b16 %v259
        %v296 = vpack.c.b16 %v289, %v288
        %v297 = vpack.c.b16 %v291, %v290
        %v298 = vpack.c.b16 %v293, %v292
        %v299 = vpack.c.b16 %v295, %v294
        %vm304 = vcmask 523264
        %v306 = vsel %vm304, %v276, 0
        %v309 = vsel %vm304, %v277, 0
        %v312 = vsel %vm304, %v278, 0
        %v315 = vsel %vm304, %v279, 0
        %317 = vmatprep.subr.bf16.mxu0 0
        %318 = vmatpush1.bf16.msra.mxu0 0
        %319 = vmatprep.subr.bf16.mxu0 0
        %320 = vmatpush1.bf16.msra.mxu0 0
        %321 = vmatprep.subr.bf16.mxu0 0
        %322 = vmatpush1.bf16.msra.mxu0 0
        %323 = vmatprep.subr.bf16.mxu0 0
        %324 = vmatpush1.bf16.msra.mxu0 0
        %325 = vmatprep.subr.bf16.mxu0 0
        %326 = vmatpush1.bf16.msra.mxu0 %v299
        %327 = vmatprep.subr.bf16.mxu0 0
        %328 = vmatpush1.bf16.msra.mxu0 %v298
        %329 = vmatprep.subr.bf16.mxu0 0
        %330 = vmatpush1.bf16.msra.mxu0 %v297
        %331 = vmatprep.subr.bf16.mxu0 0
        %332 = vmatpush1.bf16.msra.mxu0 %v296
        %333 = vmatprep.subr.bf16.mxu0 0
        %334 = vmatpush2.bf16.msra.mxu0 0
        %335 = vmatprep.subr.bf16.mxu0 0
        %336 = vmatpush2.bf16.msra.mxu0 0
        %337 = vmatprep.subr.bf16.mxu0 0
        %338 = vmatpush2.bf16.msra.mxu0 0
        %339 = vmatprep.subr.bf16.mxu0 0
        %340 = vmatpush2.bf16.msra.mxu0 0
        %341 = vmatprep.subr.bf16.mxu0 0
        %342 = vmatpush2.bf16.msra.mxu0 0
        %343 = vmatprep.subr.bf16.mxu0 0
        %344 = vmatpush2.bf16.msra.mxu0 0
        %345 = vmatprep.subr.bf16.mxu0 0
        %346 = vmatpush2.bf16.msra.mxu0 0
        %347 = vmatprep.subr.bf16.mxu0 0
        %348 = vmatpush2.bf16.msra.mxu0 0
        %349 = vmatprep.mubr.bf16.mxu0 0
        %350 = vmatmul.mubr.bf16.gmra.mxu0 %v306
        %v351 = vpop.f32.mrf.mxu0
        %v352 = vadd.f32 0.0, %v351
        %v353 = vpop.f32.mrf.mxu0
        %v354 = vpop.f32.mrf.mxu0
        %v355 = vadd.f32 0.0, %v354
        %v356 = vpop.f32.mrf.mxu0
        %357 = vmatprep.mubr.bf16.mxu0 0
        %358 = vmatmul.mubr.bf16.gmra.mxu0 %v309
        %v359 = vpop.f32.mrf.mxu0
        %v360 = vadd.f32 0.0, %v359
        %v361 = vpop.f32.mrf.mxu0
        %v362 = vpop.f32.mrf.mxu0
        %v363 = vadd.f32 0.0, %v362
        %v364 = vpop.f32.mrf.mxu0
        %365 = vmatprep.mubr.bf16.mxu0 0
        %366 = vmatmul.mubr.bf16.gmra.mxu0 %v312
        %v367 = vpop.f32.mrf.mxu0
        %v368 = vadd.f32 0.0, %v367
        %v369 = vpop.f32.mrf.mxu0
        %v370 = vpop.f32.mrf.mxu0
        %v371 = vadd.f32 0.0, %v370
        %v372 = vpop.f32.mrf.mxu0
        %373 = vmatprep.mubr.bf16.mxu0 0
        %374 = vmatmul.mubr.bf16.gmra.mxu0 %v315
        %v375 = vpop.f32.mrf.mxu0
        %v376 = vadd.f32 0.0, %v375
        %v377 = vpop.f32.mrf.mxu0
        %v378 = vpop.f32.mrf.mxu0
        %v379 = vadd.f32 0.0, %v378
        %v380 = vpop.f32.mrf.mxu0
        %381 = vdwg.mxu0
        %v382 = vld [vmem:[%s2] sm:$0xf]
        %v383 = vld [vmem:[%s2 + $0x4] sm:$0xf]
        %v384 = vld [vmem:[%s2 + $0x8] sm:$0xf]
        %v385 = vld [vmem:[%s2 + $0xc] sm:$0xf]
        %v386 = vld [vmem:[%s3] sm:$0x1]
        %v387 = vld [vmem:[%s4] sm:$0x1]
        %396 = vrot.lane.b32.xlu0 %v352, 116
        %v397 = vpop.permute.xlu0 %396
        %398 = vrot.lane.b32.xlu0 %v355, 116
        %v399 = vpop.permute.xlu0 %398
        %400 = vrot.lane.b32.xlu0 %v360, 116
        %v401 = vpop.permute.xlu0 %400
        %402 = vrot.lane.b32.xlu0 %v363, 116
        %v403 = vpop.permute.xlu0 %402
        %404 = vrot.lane.b32.xlu0 %v368, 116
        %v405 = vpop.permute.xlu0 %404
        %406 = vrot.lane.b32.xlu0 %v371, 116
        %v407 = vpop.permute.xlu0 %406
        %408 = vrot.lane.b32.xlu0 %v376, 116
        %v409 = vpop.permute.xlu0 %408
        %410 = vrot.lane.b32.xlu0 %v379, 116
        %v411 = vpop.permute.xlu0 %410
        %v420 = vmax.f32 %v352, %v397
        %v421 = vmax.f32 %v355, %v399
        %v422 = vmax.f32 %v360, %v401
        %v423 = vmax.f32 %v363, %v403
        %v424 = vmax.f32 %v368, %v405
        %v425 = vmax.f32 %v371, %v407
        %v426 = vmax.f32 %v376, %v409
        %v427 = vmax.f32 %v379, %v411
        %428 = vrot.lane.b32.xlu0 %v352, 104
        %v429 = vpop.permute.xlu0 %428
        %430 = vrot.lane.b32.xlu0 %v355, 104
        %v431 = vpop.permute.xlu0 %430
        %432 = vrot.lane.b32.xlu0 %v360, 104
        %v433 = vpop.permute.xlu0 %432
        %434 = vrot.lane.b32.xlu0 %v363, 104
        %v435 = vpop.permute.xlu0 %434
        %436 = vrot.lane.b32.xlu0 %v368, 104
        %v437 = vpop.permute.xlu0 %436
        %438 = vrot.lane.b32.xlu0 %v371, 104
        %v439 = vpop.permute.xlu0 %438
        %440 = vrot.lane.b32.xlu0 %v376, 104
        %v441 = vpop.permute.xlu0 %440
        %442 = vrot.lane.b32.xlu0 %v379, 104
        %v443 = vpop.permute.xlu0 %442
        %v452 = vmax.f32 %v420, %v429
        %v453 = vmax.f32 %v421, %v431
        %v454 = vmax.f32 %v422, %v433
        %v455 = vmax.f32 %v423, %v435
        %v456 = vmax.f32 %v424, %v437
        %v457 = vmax.f32 %v425, %v439
        %v458 = vmax.f32 %v426, %v441
        %v459 = vmax.f32 %v427, %v443
        %460 = vrot.lane.b32.xlu0 %v352, 92
        %v461 = vpop.permute.xlu0 %460
        %462 = vrot.lane.b32.xlu0 %v355, 92
        %v463 = vpop.permute.xlu0 %462
        %464 = vrot.lane.b32.xlu0 %v360, 92
        %v465 = vpop.permute.xlu0 %464
        %466 = vrot.lane.b32.xlu0 %v363, 92
        %v467 = vpop.permute.xlu0 %466
        %468 = vrot.lane.b32.xlu0 %v368, 92
        %v469 = vpop.permute.xlu0 %468
        %470 = vrot.lane.b32.xlu0 %v371, 92
        %v471 = vpop.permute.xlu0 %470
        %472 = vrot.lane.b32.xlu0 %v376, 92
        %v473 = vpop.permute.xlu0 %472
        %474 = vrot.lane.b32.xlu0 %v379, 92
        %v475 = vpop.permute.xlu0 %474
        %v484 = vmax.f32 %v452, %v461
        %v485 = vmax.f32 %v453, %v463
        %v486 = vmax.f32 %v454, %v465
        %v487 = vmax.f32 %v455, %v467
        %v488 = vmax.f32 %v456, %v469
        %v489 = vmax.f32 %v457, %v471
        %v490 = vmax.f32 %v458, %v473
        %v491 = vmax.f32 %v459, %v475
        %v492 = vpack.c.bf16 %v485, %v484
        %v493 = vpack.c.bf16 %v487, %v486
        %v494 = vpack.c.bf16 %v489, %v488
        %v495 = vpack.c.bf16 %v491, %v490
        %v496 = vpack.c.bf16 %v355, %v352
        %v497 = vpack.c.bf16 %v363, %v360
        %v498 = vpack.c.bf16 %v371, %v368
        %v499 = vpack.c.bf16 %v379, %v376
        %504 = vrot.lane.b32.xlu0 %v492, 126
        %v505 = vpop.permute.xlu0 %504
        %506 = vrot.lane.b32.xlu0 %v493, 126
        %v507 = vpop.permute.xlu0 %506
        %508 = vrot.lane.b32.xlu0 %v494, 126
        %v509 = vpop.permute.xlu0 %508
        %510 = vrot.lane.b32.xlu0 %v495, 126
        %v511 = vpop.permute.xlu0 %510
        %vm512 = vcmask 15360
        %v514 = vsel %vm512, %v496, 0
        %v517 = vsel %vm512, %v497, 0
        %v520 = vsel %vm512, %v498, 0
        %v523 = vsel %vm512, %v499, 0
        %v526 = vsel %vm512, %v505, 0
        %v529 = vsel %vm512, %v507, 0
        %v532 = vsel %vm512, %v509, 0
        %v535 = vsel %vm512, %v511, 0
        %537 = vmatprep.subr.bf16.mxu0 0
        %538 = vmatpush1.bf16.xpose.msra.mxu0 0
        %539 = vmatprep.subr.bf16.mxu0 0
        %540 = vmatpush1.bf16.xpose.msra.mxu0 0
        %541 = vmatprep.subr.bf16.mxu0 0
        %542 = vmatpush1.bf16.xpose.msra.mxu0 0
        %543 = vmatprep.subr.bf16.mxu0 0
        %544 = vmatpush1.bf16.xpose.msra.mxu0 0
        %545 = vmatprep.subr.bf16.mxu0 0
        %546 = vmatpush1.bf16.xpose.msra.mxu0 %v535
        %547 = vmatprep.subr.bf16.mxu0 0
        %548 = vmatpush1.bf16.xpose.msra.mxu0 %v532
        %549 = vmatprep.subr.bf16.mxu0 0
        %550 = vmatpush1.bf16.xpose.msra.mxu0 %v529
        %551 = vmatprep.subr.bf16.mxu0 0
        %552 = vmatpush1.bf16.xpose.msra.mxu0 %v526
        %553 = vmatprep.subr.bf16.mxu0 0
        %554 = vmatpush2.bf16.xpose.msra.mxu0 0
        %555 = vmatprep.subr.bf16.mxu0 0
        %556 = vmatpush2.bf16.xpose.msra.mxu0 0
        %557 = vmatprep.subr.bf16.mxu0 0
        %558 = vmatpush2.bf16.xpose.msra.mxu0 0
        %559 = vmatprep.subr.bf16.mxu0 0
        %560 = vmatpush2.bf16.xpose.msra.mxu0 0
        %561 = vmatprep.subr.bf16.mxu0 0
        %562 = vmatpush2.bf16.xpose.msra.mxu0 0
        %563 = vmatprep.subr.bf16.mxu0 0
        %564 = vmatpush2.bf16.xpose.msra.mxu0 0
        %565 = vmatprep.subr.bf16.mxu0 0
        %566 = vmatpush2.bf16.xpose.msra.mxu0 0
        %567 = vmatprep.subr.bf16.mxu0 0
        %568 = vmatpush2.bf16.xpose.msra.mxu0 0
        %569 = vmatprep.mubr.bf16.mxu0 0
        %570 = vmatmul.mubr.bf16.gmra.mxu0 %v514
        %v571 = vpop.f32.mrf.mxu0
        %v572 = vadd.f32 0.0, %v571
        %v573 = vpop.f32.mrf.mxu0
        %v574 = vpop.f32.mrf.mxu0
        %v575 = vadd.f32 0.0, %v574
        %v576 = vpop.f32.mrf.mxu0
        %577 = vmatprep.mubr.bf16.mxu0 0
        %578 = vmatmul.mubr.bf16.gmra.mxu0 %v517
        %v579 = vpop.f32.mrf.mxu0
        %v580 = vadd.f32 0.0, %v579
        %v581 = vpop.f32.mrf.mxu0
        %v582 = vpop.f32.mrf.mxu0
        %v583 = vadd.f32 0.0, %v582
        %v584 = vpop.f32.mrf.mxu0
        %585 = vmatprep.mubr.bf16.mxu0 0
        %586 = vmatmul.mubr.bf16.gmra.mxu0 %v520
        %v587 = vpop.f32.mrf.mxu0
        %v588 = vadd.f32 0.0, %v587
        %v589 = vpop.f32.mrf.mxu0
        %v590 = vpop.f32.mrf.mxu0
        %v591 = vadd.f32 0.0, %v590
        %v592 = vpop.f32.mrf.mxu0
        %593 = vmatprep.mubr.bf16.mxu0 0
        %594 = vmatmul.mubr.bf16.gmra.mxu0 %v523
        %v595 = vpop.f32.mrf.mxu0
        %v596 = vadd.f32 0.0, %v595
        %v597 = vpop.f32.mrf.mxu0
        %v598 = vpop.f32.mrf.mxu0
        %v599 = vadd.f32 0.0, %v598
        %v600 = vpop.f32.mrf.mxu0
        %601 = vdwg.mxu0
        %v602 = vsel %vm304, %v572, -inf
        %603 = vmax.xlane.f32.xlu0 %v602
        %v604 = vpop.xlane.xlu0 %603
        %v605 = vsel %vm304, %v575, -inf
        %606 = vmax.xlane.f32.xlu0 %v605
        %v607 = vpop.xlane.xlu0 %606
        %v608 = vsel %vm304, %v580, -inf
        %609 = vmax.xlane.f32.xlu0 %v608
        %v610 = vpop.xlane.xlu0 %609
        %v611 = vsel %vm304, %v583, -inf
        %612 = vmax.xlane.f32.xlu0 %v611
        %v613 = vpop.xlane.xlu0 %612
        %v614 = vsel %vm304, %v588, -inf
        %615 = vmax.xlane.f32.xlu0 %v614
        %v616 = vpop.xlane.xlu0 %615
        %v617 = vsel %vm304, %v591, -inf
        %618 = vmax.xlane.f32.xlu0 %v617
        %v619 = vpop.xlane.xlu0 %618
        %v620 = vsel %vm304, %v596, -inf
        %621 = vmax.xlane.f32.xlu0 %v620
        %v622 = vpop.xlane.xlu0 %621
        %v623 = vsel %vm304, %v599, -inf
        %624 = vmax.xlane.f32.xlu0 %v623
        %v625 = vpop.xlane.xlu0 %624
        %v626 = vsub.f32 %v572, %v604
        %v627 = vsub.f32 %v575, %v607
        %v628 = vsub.f32 %v580, %v610
        %v629 = vsub.f32 %v583, %v613
        %v630 = vsub.f32 %v588, %v616
        %v631 = vsub.f32 %v591, %v619
        %v632 = vsub.f32 %v596, %v622
        %v633 = vsub.f32 %v599, %v625
        %v634 = vmul.f32 %v626, 1.442695
        %v635 = vpow.pop %v634
        %v636 = vmul.f32 %v627, 1.442695
        %v637 = vpow.pop %v636
        %v638 = vmul.f32 %v628, 1.442695
        %v639 = vpow.pop %v638
        %v640 = vmul.f32 %v629, 1.442695
        %v641 = vpow.pop %v640
        %v642 = vmul.f32 %v630, 1.442695
        %v643 = vpow.pop %v642
        %v644 = vmul.f32 %v631, 1.442695
        %v645 = vpow.pop %v644
        %v646 = vmul.f32 %v632, 1.442695
        %v647 = vpow.pop %v646
        %v648 = vmul.f32 %v633, 1.442695
        %v649 = vpow.pop %v648
        %v650 = vsel %vm304, %v635, 0.0
        %651 = vadd.xlane.f32.xlu0 %v650
        %v652 = vpop.xlane.xlu0 %651
        %v653 = vsel %vm304, %v637, 0.0
        %654 = vadd.xlane.f32.xlu0 %v653
        %v655 = vpop.xlane.xlu0 %654
        %v656 = vsel %vm304, %v639, 0.0
        %657 = vadd.xlane.f32.xlu0 %v656
        %v658 = vpop.xlane.xlu0 %657
        %v659 = vsel %vm304, %v641, 0.0
        %660 = vadd.xlane.f32.xlu0 %v659
        %v661 = vpop.xlane.xlu0 %660
        %v662 = vsel %vm304, %v643, 0.0
        %663 = vadd.xlane.f32.xlu0 %v662
        %v664 = vpop.xlane.xlu0 %663
        %v665 = vsel %vm304, %v645, 0.0
        %666 = vadd.xlane.f32.xlu0 %v665
        %v667 = vpop.xlane.xlu0 %666
        %v668 = vsel %vm304, %v647, 0.0
        %669 = vadd.xlane.f32.xlu0 %v668
        %v670 = vpop.xlane.xlu0 %669
        %v671 = vsel %vm304, %v649, 0.0
        %672 = vadd.xlane.f32.xlu0 %v671
        %v673 = vpop.xlane.xlu0 %672
        %v674 = vpack.c.bf16 %v637, %v635
        %v675 = vpack.c.bf16 %v641, %v639
        %v676 = vpack.c.bf16 %v645, %v643
        %v677 = vpack.c.bf16 %v649, %v647
        %678 = vrot.lane.b32.xlu0 %v492, 124
        %v679 = vpop.permute.xlu0 %678
        %680 = vrot.lane.b32.xlu0 %v493, 124
        %v681 = vpop.permute.xlu0 %680
        %682 = vrot.lane.b32.xlu0 %v494, 124
        %v683 = vpop.permute.xlu0 %682
        %684 = vrot.lane.b32.xlu0 %v495, 124
        %v685 = vpop.permute.xlu0 %684
        %v691 = vsel %vm304, %v674, 0
        %v694 = vsel %vm304, %v675, 0
        %v697 = vsel %vm304, %v676, 0
        %v700 = vsel %vm304, %v677, 0
        %702 = vmatprep.subr.bf16.mxu0 0
        %703 = vmatpush1.bf16.msra.mxu0 0
        %704 = vmatprep.subr.bf16.mxu0 0
        %705 = vmatpush1.bf16.msra.mxu0 0
        %706 = vmatprep.subr.bf16.mxu0 0
        %707 = vmatpush1.bf16.msra.mxu0 0
        %708 = vmatprep.subr.bf16.mxu0 0
        %709 = vmatpush1.bf16.msra.mxu0 0
        %710 = vmatprep.subr.bf16.mxu0 0
        %711 = vmatpush1.bf16.msra.mxu0 %v685
        %712 = vmatprep.subr.bf16.mxu0 0
        %713 = vmatpush1.bf16.msra.mxu0 %v683
        %714 = vmatprep.subr.bf16.mxu0 0
        %715 = vmatpush1.bf16.msra.mxu0 %v681
        %716 = vmatprep.subr.bf16.mxu0 0
        %717 = vmatpush1.bf16.msra.mxu0 %v679
        %718 = vmatprep.subr.bf16.mxu0 0
        %719 = vmatpush2.bf16.msra.mxu0 0
        %720 = vmatprep.subr.bf16.mxu0 0
        %721 = vmatpush2.bf16.msra.mxu0 0
        %722 = vmatprep.subr.bf16.mxu0 0
        %723 = vmatpush2.bf16.msra.mxu0 0
        %724 = vmatprep.subr.bf16.mxu0 0
        %725 = vmatpush2.bf16.msra.mxu0 0
        %726 = vmatprep.subr.bf16.mxu0 0
        %727 = vmatpush2.bf16.msra.mxu0 0
        %728 = vmatprep.subr.bf16.mxu0 0
        %729 = vmatpush2.bf16.msra.mxu0 0
        %730 = vmatprep.subr.bf16.mxu0 0
        %731 = vmatpush2.bf16.msra.mxu0 0
        %732 = vmatprep.subr.bf16.mxu0 0
        %733 = vmatpush2.bf16.msra.mxu0 0
        %734 = vmatprep.mubr.bf16.mxu0 0
        %735 = vmatmul.mubr.bf16.gmra.mxu0 %v691
        %v736 = vpop.f32.mrf.mxu0
        %v737 = vadd.f32 0.0, %v736
        %v738 = vpop.f32.mrf.mxu0
        %v739 = vpop.f32.mrf.mxu0
        %v740 = vadd.f32 0.0, %v739
        %v741 = vpop.f32.mrf.mxu0
        %742 = vmatprep.mubr.bf16.mxu0 0
        %743 = vmatmul.mubr.bf16.gmra.mxu0 %v694
        %v744 = vpop.f32.mrf.mxu0
        %v745 = vadd.f32 0.0, %v744
        %v746 = vpop.f32.mrf.mxu0
        %v747 = vpop.f32.mrf.mxu0
        %v748 = vadd.f32 0.0, %v747
        %v749 = vpop.f32.mrf.mxu0
        %750 = vmatprep.mubr.bf16.mxu0 0
        %751 = vmatmul.mubr.bf16.gmra.mxu0 %v697
        %v752 = vpop.f32.mrf.mxu0
        %v753 = vadd.f32 0.0, %v752
        %v754 = vpop.f32.mrf.mxu0
        %v755 = vpop.f32.mrf.mxu0
        %v756 = vadd.f32 0.0, %v755
        %v757 = vpop.f32.mrf.mxu0
        %758 = vmatprep.mubr.bf16.mxu0 0
        %759 = vmatmul.mubr.bf16.gmra.mxu0 %v700
        %v760 = vpop.f32.mrf.mxu0
        %v761 = vadd.f32 0.0, %v760
        %v762 = vpop.f32.mrf.mxu0
        %v763 = vpop.f32.mrf.mxu0
        %v764 = vadd.f32 0.0, %v763
        %v765 = vpop.f32.mrf.mxu0
        %766 = vdwg.mxu0
        %v767 = vrcp.pop %v652
        %v768 = vrcp.pop %v655
        %v769 = vrcp.pop %v658
        %v770 = vrcp.pop %v661
        %v771 = vrcp.pop %v664
        %v772 = vrcp.pop %v667
        %v773 = vrcp.pop %v670
        %v774 = vrcp.pop %v673
        %v775 = vmul.f32 %v737, %v767
        %v776 = vmul.f32 %v740, %v768
        %v777 = vmul.f32 %v745, %v769
        %v778 = vmul.f32 %v748, %v770
        %v779 = vmul.f32 %v753, %v771
        %v780 = vmul.f32 %v756, %v772
        %v781 = vmul.f32 %v761, %v773
        %v782 = vmul.f32 %v764, %v774
        %787 = vrot.lane.b32.xlu0 %v496, 116
        %v788 = vpop.permute.xlu0 %787
        %789 = vrot.lane.b32.xlu0 %v497, 116
        %v790 = vpop.permute.xlu0 %789
        %791 = vrot.lane.b32.xlu0 %v498, 116
        %v792 = vpop.permute.xlu0 %791
        %793 = vrot.lane.b32.xlu0 %v499, 116
        %v794 = vpop.permute.xlu0 %793
        %v796 = vsel %vm512, %v788, 0
        %v799 = vsel %vm512, %v790, 0
        %v802 = vsel %vm512, %v792, 0
        %v805 = vsel %vm512, %v794, 0
        %807 = vmatprep.subr.bf16.mxu0 0
        %808 = vmatpush1.bf16.xpose.msra.mxu0 0
        %809 = vmatprep.subr.bf16.mxu0 0
        %810 = vmatpush1.bf16.xpose.msra.mxu0 0
        %811 = vmatprep.subr.bf16.mxu0 0
        %812 = vmatpush1.bf16.xpose.msra.mxu0 0
        %813 = vmatprep.subr.bf16.mxu0 0
        %814 = vmatpush1.bf16.xpose.msra.mxu0 0
        %815 = vmatprep.subr.bf16.mxu0 0
        %816 = vmatpush1.bf16.xpose.msra.mxu0 %v535
        %817 = vmatprep.subr.bf16.mxu0 0
        %818 = vmatpush1.bf16.xpose.msra.mxu0 %v532
        %819 = vmatprep.subr.bf16.mxu0 0
        %820 = vmatpush1.bf16.xpose.msra.mxu0 %v529
        %821 = vmatprep.subr.bf16.mxu0 0
        %822 = vmatpush1.bf16.xpose.msra.mxu0 %v526
        %823 = vmatprep.subr.bf16.mxu0 0
        %824 = vmatpush2.bf16.xpose.msra.mxu0 0
        %825 = vmatprep.subr.bf16.mxu0 0
        %826 = vmatpush2.bf16.xpose.msra.mxu0 0
        %827 = vmatprep.subr.bf16.mxu0 0
        %828 = vmatpush2.bf16.xpose.msra.mxu0 0
        %829 = vmatprep.subr.bf16.mxu0 0
        %830 = vmatpush2.bf16.xpose.msra.mxu0 0
        %831 = vmatprep.subr.bf16.mxu0 0
        %832 = vmatpush2.bf16.xpose.msra.mxu0 0
        %833 = vmatprep.subr.bf16.mxu0 0
        %834 = vmatpush2.bf16.xpose.msra.mxu0 0
        %835 = vmatprep.subr.bf16.mxu0 0
        %836 = vmatpush2.bf16.xpose.msra.mxu0 0
        %837 = vmatprep.subr.bf16.mxu0 0
        %838 = vmatpush2.bf16.xpose.msra.mxu0 0
        %839 = vmatprep.mubr.bf16.mxu0 0
        %840 = vmatmul.mubr.bf16.gmra.mxu0 %v796
        %v841 = vpop.f32.mrf.mxu0
        %v842 = vadd.f32 0.0, %v841
        %v843 = vpop.f32.mrf.mxu0
        %v844 = vpop.f32.mrf.mxu0
        %v845 = vadd.f32 0.0, %v844
        %v846 = vpop.f32.mrf.mxu0
        %847 = vmatprep.mubr.bf16.mxu0 0
        %848 = vmatmul.mubr.bf16.gmra.mxu0 %v799
        %v849 = vpop.f32.mrf.mxu0
        %v850 = vadd.f32 0.0, %v849
        %v851 = vpop.f32.mrf.mxu0
        %v852 = vpop.f32.mrf.mxu0
        %v853 = vadd.f32 0.0, %v852
        %v854 = vpop.f32.mrf.mxu0
        %855 = vmatprep.mubr.bf16.mxu0 0
        %856 = vmatmul.mubr.bf16.gmra.mxu0 %v802
        %v857 = vpop.f32.mrf.mxu0
        %v858 = vadd.f32 0.0, %v857
        %v859 = vpop.f32.mrf.mxu0
        %v860 = vpop.f32.mrf.mxu0
        %v861 = vadd.f32 0.0, %v860
        %v862 = vpop.f32.mrf.mxu0
        %863 = vmatprep.mubr.bf16.mxu0 0
        %864 = vmatmul.mubr.bf16.gmra.mxu0 %v805
        %v865 = vpop.f32.mrf.mxu0
        %v866 = vadd.f32 0.0, %v865
        %v867 = vpop.f32.mrf.mxu0
        %v868 = vpop.f32.mrf.mxu0
        %v869 = vadd.f32 0.0, %v868
        %v870 = vpop.f32.mrf.mxu0
        %871 = vdwg.mxu0
        %v872 = vsel %vm304, %v842, -inf
        %873 = vmax.xlane.f32.xlu0 %v872
        %v874 = vpop.xlane.xlu0 %873
        %v875 = vsel %vm304, %v845, -inf
        %876 = vmax.xlane.f32.xlu0 %v875
        %v877 = vpop.xlane.xlu0 %876
        %v878 = vsel %vm304, %v850, -inf
        %879 = vmax.xlane.f32.xlu0 %v878
        %v880 = vpop.xlane.xlu0 %879
        %v881 = vsel %vm304, %v853, -inf
        %882 = vmax.xlane.f32.xlu0 %v881
        %v883 = vpop.xlane.xlu0 %882
        %v884 = vsel %vm304, %v858, -inf
        %885 = vmax.xlane.f32.xlu0 %v884
        %v886 = vpop.xlane.xlu0 %885
        %v887 = vsel %vm304, %v861, -inf
        %888 = vmax.xlane.f32.xlu0 %v887
        %v889 = vpop.xlane.xlu0 %888
        %v890 = vsel %vm304, %v866, -inf
        %891 = vmax.xlane.f32.xlu0 %v890
        %v892 = vpop.xlane.xlu0 %891
        %v893 = vsel %vm304, %v869, -inf
        %894 = vmax.xlane.f32.xlu0 %v893
        %v895 = vpop.xlane.xlu0 %894
        %v896 = vsub.f32 %v842, %v874
        %v897 = vsub.f32 %v845, %v877
        %v898 = vsub.f32 %v850, %v880
        %v899 = vsub.f32 %v853, %v883
        %v900 = vsub.f32 %v858, %v886
        %v901 = vsub.f32 %v861, %v889
        %v902 = vsub.f32 %v866, %v892
        %v903 = vsub.f32 %v869, %v895
        %v904 = vmul.f32 %v896, 1.442695
        %v905 = vpow.pop %v904
        %v906 = vmul.f32 %v897, 1.442695
        %v907 = vpow.pop %v906
        %v908 = vmul.f32 %v898, 1.442695
        %v909 = vpow.pop %v908
        %v910 = vmul.f32 %v899, 1.442695
        %v911 = vpow.pop %v910
        %v912 = vmul.f32 %v900, 1.442695
        %v913 = vpow.pop %v912
        %v914 = vmul.f32 %v901, 1.442695
        %v915 = vpow.pop %v914
        %v916 = vmul.f32 %v902, 1.442695
        %v917 = vpow.pop %v916
        %v918 = vmul.f32 %v903, 1.442695
        %v919 = vpow.pop %v918
        %v920 = vsel %vm304, %v905, 0.0
        %921 = vadd.xlane.f32.xlu0 %v920
        %v922 = vpop.xlane.xlu0 %921
        %v923 = vsel %vm304, %v907, 0.0
        %924 = vadd.xlane.f32.xlu0 %v923
        %v925 = vpop.xlane.xlu0 %924
        %v926 = vsel %vm304, %v909, 0.0
        %927 = vadd.xlane.f32.xlu0 %v926
        %v928 = vpop.xlane.xlu0 %927
        %v929 = vsel %vm304, %v911, 0.0
        %930 = vadd.xlane.f32.xlu0 %v929
        %v931 = vpop.xlane.xlu0 %930
        %v932 = vsel %vm304, %v913, 0.0
        %933 = vadd.xlane.f32.xlu0 %v932
        %v934 = vpop.xlane.xlu0 %933
        %v935 = vsel %vm304, %v915, 0.0
        %936 = vadd.xlane.f32.xlu0 %v935
        %v937 = vpop.xlane.xlu0 %936
        %v938 = vsel %vm304, %v917, 0.0
        %939 = vadd.xlane.f32.xlu0 %v938
        %v940 = vpop.xlane.xlu0 %939
        %v941 = vsel %vm304, %v919, 0.0
        %942 = vadd.xlane.f32.xlu0 %v941
        %v943 = vpop.xlane.xlu0 %942
        %v944 = vpack.c.bf16 %v907, %v905
        %v945 = vpack.c.bf16 %v911, %v909
        %v946 = vpack.c.bf16 %v915, %v913
        %v947 = vpack.c.bf16 %v919, %v917
        %v949 = vsel %vm304, %v944, 0
        %v952 = vsel %vm304, %v945, 0
        %v955 = vsel %vm304, %v946, 0
        %v958 = vsel %vm304, %v947, 0
        %960 = vmatprep.subr.bf16.mxu0 0
        %961 = vmatpush1.bf16.msra.mxu0 0
        %962 = vmatprep.subr.bf16.mxu0 0
        %963 = vmatpush1.bf16.msra.mxu0 0
        %964 = vmatprep.subr.bf16.mxu0 0
        %965 = vmatpush1.bf16.msra.mxu0 0
        %966 = vmatprep.subr.bf16.mxu0 0
        %967 = vmatpush1.bf16.msra.mxu0 0
        %968 = vmatprep.subr.bf16.mxu0 0
        %969 = vmatpush1.bf16.msra.mxu0 %v685
        %970 = vmatprep.subr.bf16.mxu0 0
        %971 = vmatpush1.bf16.msra.mxu0 %v683
        %972 = vmatprep.subr.bf16.mxu0 0
        %973 = vmatpush1.bf16.msra.mxu0 %v681
        %974 = vmatprep.subr.bf16.mxu0 0
        %975 = vmatpush1.bf16.msra.mxu0 %v679
        %976 = vmatprep.subr.bf16.mxu0 0
        %977 = vmatpush2.bf16.msra.mxu0 0
        %978 = vmatprep.subr.bf16.mxu0 0
        %979 = vmatpush2.bf16.msra.mxu0 0
        %980 = vmatprep.subr.bf16.mxu0 0
        %981 = vmatpush2.bf16.msra.mxu0 0
        %982 = vmatprep.subr.bf16.mxu0 0
        %983 = vmatpush2.bf16.msra.mxu0 0
        %984 = vmatprep.subr.bf16.mxu0 0
        %985 = vmatpush2.bf16.msra.mxu0 0
        %986 = vmatprep.subr.bf16.mxu0 0
        %987 = vmatpush2.bf16.msra.mxu0 0
        %988 = vmatprep.subr.bf16.mxu0 0
        %989 = vmatpush2.bf16.msra.mxu0 0
        %990 = vmatprep.subr.bf16.mxu0 0
        %991 = vmatpush2.bf16.msra.mxu0 0
        %992 = vmatprep.mubr.bf16.mxu0 0
        %993 = vmatmul.mubr.bf16.gmra.mxu0 %v949
        %v994 = vpop.f32.mrf.mxu0
        %v995 = vadd.f32 0.0, %v994
        %v996 = vpop.f32.mrf.mxu0
        %v997 = vpop.f32.mrf.mxu0
        %v998 = vadd.f32 0.0, %v997
        %v999 = vpop.f32.mrf.mxu0
        %1000 = vmatprep.mubr.bf16.mxu0 0
        %1001 = vmatmul.mubr.bf16.gmra.mxu0 %v952
        %v1002 = vpop.f32.mrf.mxu0
        %v1003 = vadd.f32 0.0, %v1002
        %v1004 = vpop.f32.mrf.mxu0
        %v1005 = vpop.f32.mrf.mxu0
        %v1006 = vadd.f32 0.0, %v1005
        %v1007 = vpop.f32.mrf.mxu0
        %1008 = vmatprep.mubr.bf16.mxu0 0
        %1009 = vmatmul.mubr.bf16.gmra.mxu0 %v955
        %v1010 = vpop.f32.mrf.mxu0
        %v1011 = vadd.f32 0.0, %v1010
        %v1012 = vpop.f32.mrf.mxu0
        %v1013 = vpop.f32.mrf.mxu0
        %v1014 = vadd.f32 0.0, %v1013
        %v1015 = vpop.f32.mrf.mxu0
        %1016 = vmatprep.mubr.bf16.mxu0 0
        %1017 = vmatmul.mubr.bf16.gmra.mxu0 %v958
        %v1018 = vpop.f32.mrf.mxu0
        %v1019 = vadd.f32 0.0, %v1018
        %v1020 = vpop.f32.mrf.mxu0
        %v1021 = vpop.f32.mrf.mxu0
        %v1022 = vadd.f32 0.0, %v1021
        %v1023 = vpop.f32.mrf.mxu0
        %1024 = vdwg.mxu0
        %v1025 = vrcp.pop %v922
        %v1026 = vrcp.pop %v925
        %v1027 = vrcp.pop %v928
        %v1028 = vrcp.pop %v931
        %v1029 = vrcp.pop %v934
        %v1030 = vrcp.pop %v937
        %v1031 = vrcp.pop %v940
        %v1032 = vrcp.pop %v943
        %v1033 = vmul.f32 %v995, %v1025
        %v1034 = vmul.f32 %v998, %v1026
        %v1035 = vmul.f32 %v1003, %v1027
        %v1036 = vmul.f32 %v1006, %v1028
        %v1037 = vmul.f32 %v1011, %v1029
        %v1038 = vmul.f32 %v1014, %v1030
        %v1039 = vmul.f32 %v1019, %v1031
        %v1040 = vmul.f32 %v1022, %v1032
        %1041 = vrot.lane.b32.xlu0 %v496, 104
        %v1042 = vpop.permute.xlu0 %1041
        %1043 = vrot.lane.b32.xlu0 %v497, 104
        %v1044 = vpop.permute.xlu0 %1043
        %1045 = vrot.lane.b32.xlu0 %v498, 104
        %v1046 = vpop.permute.xlu0 %1045
        %1047 = vrot.lane.b32.xlu0 %v499, 104
        %v1048 = vpop.permute.xlu0 %1047
        %v1050 = vsel %vm512, %v1042, 0
        %v1053 = vsel %vm512, %v1044, 0
        %v1056 = vsel %vm512, %v1046, 0
        %v1059 = vsel %vm512, %v1048, 0
        %1061 = vmatprep.subr.bf16.mxu0 0
        %1062 = vmatpush1.bf16.xpose.msra.mxu0 0
        %1063 = vmatprep.subr.bf16.mxu0 0
        %1064 = vmatpush1.bf16.xpose.msra.mxu0 0
        %1065 = vmatprep.subr.bf16.mxu0 0
        %1066 = vmatpush1.bf16.xpose.msra.mxu0 0
        %1067 = vmatprep.subr.bf16.mxu0 0
        %1068 = vmatpush1.bf16.xpose.msra.mxu0 0
        %1069 = vmatprep.subr.bf16.mxu0 0
        %1070 = vmatpush1.bf16.xpose.msra.mxu0 %v535
        %1071 = vmatprep.subr.bf16.mxu0 0
        %1072 = vmatpush1.bf16.xpose.msra.mxu0 %v532
        %1073 = vmatprep.subr.bf16.mxu0 0
        %1074 = vmatpush1.bf16.xpose.msra.mxu0 %v529
        %1075 = vmatprep.subr.bf16.mxu0 0
        %1076 = vmatpush1.bf16.xpose.msra.mxu0 %v526
        %1077 = vmatprep.subr.bf16.mxu0 0
        %1078 = vmatpush2.bf16.xpose.msra.mxu0 0
        %1079 = vmatprep.subr.bf16.mxu0 0
        %1080 = vmatpush2.bf16.xpose.msra.mxu0 0
        %1081 = vmatprep.subr.bf16.mxu0 0
        %1082 = vmatpush2.bf16.xpose.msra.mxu0 0
        %1083 = vmatprep.subr.bf16.mxu0 0
        %1084 = vmatpush2.bf16.xpose.msra.mxu0 0
        %1085 = vmatprep.subr.bf16.mxu0 0
        %1086 = vmatpush2.bf16.xpose.msra.mxu0 0
        %1087 = vmatprep.subr.bf16.mxu0 0
        %1088 = vmatpush2.bf16.xpose.msra.mxu0 0
        %1089 = vmatprep.subr.bf16.mxu0 0
        %1090 = vmatpush2.bf16.xpose.msra.mxu0 0
        %1091 = vmatprep.subr.bf16.mxu0 0
        %1092 = vmatpush2.bf16.xpose.msra.mxu0 0
        %1093 = vmatprep.mubr.bf16.mxu0 0
        %1094 = vmatmul.mubr.bf16.gmra.mxu0 %v1050
        %v1095 = vpop.f32.mrf.mxu0
        %v1096 = vadd.f32 0.0, %v1095
        %v1097 = vpop.f32.mrf.mxu0
        %v1098 = vpop.f32.mrf.mxu0
        %v1099 = vadd.f32 0.0, %v1098
        %v1100 = vpop.f32.mrf.mxu0
        %1101 = vmatprep.mubr.bf16.mxu0 0
        %1102 = vmatmul.mubr.bf16.gmra.mxu0 %v1053
        %v1103 = vpop.f32.mrf.mxu0
        %v1104 = vadd.f32 0.0, %v1103
        %v1105 = vpop.f32.mrf.mxu0
        %v1106 = vpop.f32.mrf.mxu0
        %v1107 = vadd.f32 0.0, %v1106
        %v1108 = vpop.f32.mrf.mxu0
        %1109 = vmatprep.mubr.bf16.mxu0 0
        %1110 = vmatmul.mubr.bf16.gmra.mxu0 %v1056
        %v1111 = vpop.f32.mrf.mxu0
        %v1112 = vadd.f32 0.0, %v1111
        %v1113 = vpop.f32.mrf.mxu0
        %v1114 = vpop.f32.mrf.mxu0
        %v1115 = vadd.f32 0.0, %v1114
        %v1116 = vpop.f32.mrf.mxu0
        %1117 = vmatprep.mubr.bf16.mxu0 0
        %1118 = vmatmul.mubr.bf16.gmra.mxu0 %v1059
        %v1119 = vpop.f32.mrf.mxu0
        %v1120 = vadd.f32 0.0, %v1119
        %v1121 = vpop.f32.mrf.mxu0
        %v1122 = vpop.f32.mrf.mxu0
        %v1123 = vadd.f32 0.0, %v1122
        %v1124 = vpop.f32.mrf.mxu0
        %1125 = vdwg.mxu0
        %v1126 = vsel %vm304, %v1096, -inf
        %1127 = vmax.xlane.f32.xlu0 %v1126
        %v1128 = vpop.xlane.xlu0 %1127
        %v1129 = vsel %vm304, %v1099, -inf
        %1130 = vmax.xlane.f32.xlu0 %v1129
        %v1131 = vpop.xlane.xlu0 %1130
        %v1132 = vsel %vm304, %v1104, -inf
        %1133 = vmax.xlane.f32.xlu0 %v1132
        %v1134 = vpop.xlane.xlu0 %1133
        %v1135 = vsel %vm304, %v1107, -inf
        %1136 = vmax.xlane.f32.xlu0 %v1135
        %v1137 = vpop.xlane.xlu0 %1136
        %v1138 = vsel %vm304, %v1112, -inf
        %1139 = vmax.xlane.f32.xlu0 %v1138
        %v1140 = vpop.xlane.xlu0 %1139
        %v1141 = vsel %vm304, %v1115, -inf
        %1142 = vmax.xlane.f32.xlu0 %v1141
        %v1143 = vpop.xlane.xlu0 %1142
        %v1144 = vsel %vm304, %v1120, -inf
        %1145 = vmax.xlane.f32.xlu0 %v1144
        %v1146 = vpop.xlane.xlu0 %1145
        %v1147 = vsel %vm304, %v1123, -inf
        %1148 = vmax.xlane.f32.xlu0 %v1147
        %v1149 = vpop.xlane.xlu0 %1148
        %v1150 = vsub.f32 %v1096, %v1128
        %v1151 = vsub.f32 %v1099, %v1131
        %v1152 = vsub.f32 %v1104, %v1134
        %v1153 = vsub.f32 %v1107, %v1137
        %v1154 = vsub.f32 %v1112, %v1140
        %v1155 = vsub.f32 %v1115, %v1143
        %v1156 = vsub.f32 %v1120, %v1146
        %v1157 = vsub.f32 %v1123, %v1149
        %v1158 = vmul.f32 %v1150, 1.442695
        %v1159 = vpow.pop %v1158
        %v1160 = vmul.f32 %v1151, 1.442695
        %v1161 = vpow.pop %v1160
        %v1162 = vmul.f32 %v1152, 1.442695
        %v1163 = vpow.pop %v1162
        %v1164 = vmul.f32 %v1153, 1.442695
        %v1165 = vpow.pop %v1164
        %v1166 = vmul.f32 %v1154, 1.442695
        %v1167 = vpow.pop %v1166
        %v1168 = vmul.f32 %v1155, 1.442695
        %v1169 = vpow.pop %v1168
        %v1170 = vmul.f32 %v1156, 1.442695
        %v1171 = vpow.pop %v1170
        %v1172 = vmul.f32 %v1157, 1.442695
        %v1173 = vpow.pop %v1172
        %v1174 = vsel %vm304, %v1159, 0.0
        %1175 = vadd.xlane.f32.xlu0 %v1174
        %v1176 = vpop.xlane.xlu0 %1175
        %v1177 = vsel %vm304, %v1161, 0.0
        %1178 = vadd.xlane.f32.xlu0 %v1177
        %v1179 = vpop.xlane.xlu0 %1178
        %v1180 = vsel %vm304, %v1163, 0.0
        %1181 = vadd.xlane.f32.xlu0 %v1180
        %v1182 = vpop.xlane.xlu0 %1181
        %v1183 = vsel %vm304, %v1165, 0.0
        %1184 = vadd.xlane.f32.xlu0 %v1183
        %v1185 = vpop.xlane.xlu0 %1184
        %v1186 = vsel %vm304, %v1167, 0.0
        %1187 = vadd.xlane.f32.xlu0 %v1186
        %v1188 = vpop.xlane.xlu0 %1187
        %v1189 = vsel %vm304, %v1169, 0.0
        %1190 = vadd.xlane.f32.xlu0 %v1189
        %v1191 = vpop.xlane.xlu0 %1190
        %v1192 = vsel %vm304, %v1171, 0.0
        %1193 = vadd.xlane.f32.xlu0 %v1192
        %v1194 = vpop.xlane.xlu0 %1193
        %v1195 = vsel %vm304, %v1173, 0.0
        %1196 = vadd.xlane.f32.xlu0 %v1195
        %v1197 = vpop.xlane.xlu0 %1196
        %v1198 = vpack.c.bf16 %v1161, %v1159
        %v1199 = vpack.c.bf16 %v1165, %v1163
        %v1200 = vpack.c.bf16 %v1169, %v1167
        %v1201 = vpack.c.bf16 %v1173, %v1171
        %v1203 = vsel %vm304, %v1198, 0
        %v1206 = vsel %vm304, %v1199, 0
        %v1209 = vsel %vm304, %v1200, 0
        %v1212 = vsel %vm304, %v1201, 0
        %1214 = vmatprep.subr.bf16.mxu0 0
        %1215 = vmatpush1.bf16.msra.mxu0 0
        %1216 = vmatprep.subr.bf16.mxu0 0
        %1217 = vmatpush1.bf16.msra.mxu0 0
        %1218 = vmatprep.subr.bf16.mxu0 0
        %1219 = vmatpush1.bf16.msra.mxu0 0
        %1220 = vmatprep.subr.bf16.mxu0 0
        %1221 = vmatpush1.bf16.msra.mxu0 0
        %1222 = vmatprep.subr.bf16.mxu0 0
        %1223 = vmatpush1.bf16.msra.mxu0 %v685
        %1224 = vmatprep.subr.bf16.mxu0 0
        %1225 = vmatpush1.bf16.msra.mxu0 %v683
        %1226 = vmatprep.subr.bf16.mxu0 0
        %1227 = vmatpush1.bf16.msra.mxu0 %v681
        %1228 = vmatprep.subr.bf16.mxu0 0
        %1229 = vmatpush1.bf16.msra.mxu0 %v679
        %1230 = vmatprep.subr.bf16.mxu0 0
        %1231 = vmatpush2.bf16.msra.mxu0 0
        %1232 = vmatprep.subr.bf16.mxu0 0
        %1233 = vmatpush2.bf16.msra.mxu0 0
        %1234 = vmatprep.subr.bf16.mxu0 0
        %1235 = vmatpush2.bf16.msra.mxu0 0
        %1236 = vmatprep.subr.bf16.mxu0 0
        %1237 = vmatpush2.bf16.msra.mxu0 0
        %1238 = vmatprep.subr.bf16.mxu0 0
        %1239 = vmatpush2.bf16.msra.mxu0 0
        %1240 = vmatprep.subr.bf16.mxu0 0
        %1241 = vmatpush2.bf16.msra.mxu0 0
        %1242 = vmatprep.subr.bf16.mxu0 0
        %1243 = vmatpush2.bf16.msra.mxu0 0
        %1244 = vmatprep.subr.bf16.mxu0 0
        %1245 = vmatpush2.bf16.msra.mxu0 0
        %1246 = vmatprep.mubr.bf16.mxu0 0
        %1247 = vmatmul.mubr.bf16.gmra.mxu0 %v1203
        %v1248 = vpop.f32.mrf.mxu0
        %v1249 = vadd.f32 0.0, %v1248
        %v1250 = vpop.f32.mrf.mxu0
        %v1251 = vpop.f32.mrf.mxu0
        %v1252 = vadd.f32 0.0, %v1251
        %v1253 = vpop.f32.mrf.mxu0
        %1254 = vmatprep.mubr.bf16.mxu0 0
        %1255 = vmatmul.mubr.bf16.gmra.mxu0 %v1206
        %v1256 = vpop.f32.mrf.mxu0
        %v1257 = vadd.f32 0.0, %v1256
        %v1258 = vpop.f32.mrf.mxu0
        %v1259 = vpop.f32.mrf.mxu0
        %v1260 = vadd.f32 0.0, %v1259
        %v1261 = vpop.f32.mrf.mxu0
        %1262 = vmatprep.mubr.bf16.mxu0 0
        %1263 = vmatmul.mubr.bf16.gmra.mxu0 %v1209
        %v1264 = vpop.f32.mrf.mxu0
        %v1265 = vadd.f32 0.0, %v1264
        %v1266 = vpop.f32.mrf.mxu0
        %v1267 = vpop.f32.mrf.mxu0
        %v1268 = vadd.f32 0.0, %v1267
        %v1269 = vpop.f32.mrf.mxu0
        %1270 = vmatprep.mubr.bf16.mxu0 0
        %1271 = vmatmul.mubr.bf16.gmra.mxu0 %v1212
        %v1272 = vpop.f32.mrf.mxu0
        %v1273 = vadd.f32 0.0, %v1272
        %v1274 = vpop.f32.mrf.mxu0
        %v1275 = vpop.f32.mrf.mxu0
        %v1276 = vadd.f32 0.0, %v1275
        %v1277 = vpop.f32.mrf.mxu0
        %1278 = vdwg.mxu0
        %v1279 = vrcp.pop %v1176
        %v1280 = vrcp.pop %v1179
        %v1281 = vrcp.pop %v1182
        %v1282 = vrcp.pop %v1185
        %v1283 = vrcp.pop %v1188
        %v1284 = vrcp.pop %v1191
        %v1285 = vrcp.pop %v1194
        %v1286 = vrcp.pop %v1197
        %v1287 = vmul.f32 %v1249, %v1279
        %v1288 = vmul.f32 %v1252, %v1280
        %v1289 = vmul.f32 %v1257, %v1281
        %v1290 = vmul.f32 %v1260, %v1282
        %v1291 = vmul.f32 %v1265, %v1283
        %v1292 = vmul.f32 %v1268, %v1284
        %v1293 = vmul.f32 %v1273, %v1285
        %v1294 = vmul.f32 %v1276, %v1286
        %1295 = vrot.lane.b32.xlu0 %v496, 92
        %v1296 = vpop.permute.xlu0 %1295
        %1297 = vrot.lane.b32.xlu0 %v497, 92
        %v1298 = vpop.permute.xlu0 %1297
        %1299 = vrot.lane.b32.xlu0 %v498, 92
        %v1300 = vpop.permute.xlu0 %1299
        %1301 = vrot.lane.b32.xlu0 %v499, 92
        %v1302 = vpop.permute.xlu0 %1301
        %v1304 = vsel %vm512, %v1296, 0
        %v1307 = vsel %vm512, %v1298, 0
        %v1310 = vsel %vm512, %v1300, 0
        %v1313 = vsel %vm512, %v1302, 0
        %1315 = vmatprep.subr.bf16.mxu0 0
        %1316 = vmatpush1.bf16.xpose.msra.mxu0 0
        %1317 = vmatprep.subr.bf16.mxu0 0
        %1318 = vmatpush1.bf16.xpose.msra.mxu0 0
        %1319 = vmatprep.subr.bf16.mxu0 0
        %1320 = vmatpush1.bf16.xpose.msra.mxu0 0
        %1321 = vmatprep.subr.bf16.mxu0 0
        %1322 = vmatpush1.bf16.xpose.msra.mxu0 0
        %1323 = vmatprep.subr.bf16.mxu0 0
        %1324 = vmatpush1.bf16.xpose.msra.mxu0 %v535
        %1325 = vmatprep.subr.bf16.mxu0 0
        %1326 = vmatpush1.bf16.xpose.msra.mxu0 %v532
        %1327 = vmatprep.subr.bf16.mxu0 0
        %1328 = vmatpush1.bf16.xpose.msra.mxu0 %v529
        %1329 = vmatprep.subr.bf16.mxu0 0
        %1330 = vmatpush1.bf16.xpose.msra.mxu0 %v526
        %1331 = vmatprep.subr.bf16.mxu0 0
        %1332 = vmatpush2.bf16.xpose.msra.mxu0 0
        %1333 = vmatprep.subr.bf16.mxu0 0
        %1334 = vmatpush2.bf16.xpose.msra.mxu0 0
        %1335 = vmatprep.subr.bf16.mxu0 0
        %1336 = vmatpush2.bf16.xpose.msra.mxu0 0
        %1337 = vmatprep.subr.bf16.mxu0 0
        %1338 = vmatpush2.bf16.xpose.msra.mxu0 0
        %1339 = vmatprep.subr.bf16.mxu0 0
        %1340 = vmatpush2.bf16.xpose.msra.mxu0 0
        %1341 = vmatprep.subr.bf16.mxu0 0
        %1342 = vmatpush2.bf16.xpose.msra.mxu0 0
        %1343 = vmatprep.subr.bf16.mxu0 0
        %1344 = vmatpush2.bf16.xpose.msra.mxu0 0
        %1345 = vmatprep.subr.bf16.mxu0 0
        %1346 = vmatpush2.bf16.xpose.msra.mxu0 0
        %1347 = vmatprep.mubr.bf16.mxu0 0
        %1348 = vmatmul.mubr.bf16.gmra.mxu0 %v1304
        %v1349 = vpop.f32.mrf.mxu0
        %v1350 = vadd.f32 0.0, %v1349
        %v1351 = vpop.f32.mrf.mxu0
        %v1352 = vpop.f32.mrf.mxu0
        %v1353 = vadd.f32 0.0, %v1352
        %v1354 = vpop.f32.mrf.mxu0
        %1355 = vmatprep.mubr.bf16.mxu0 0
        %1356 = vmatmul.mubr.bf16.gmra.mxu0 %v1307
        %v1357 = vpop.f32.mrf.mxu0
        %v1358 = vadd.f32 0.0, %v1357
        %v1359 = vpop.f32.mrf.mxu0
        %v1360 = vpop.f32.mrf.mxu0
        %v1361 = vadd.f32 0.0, %v1360
        %v1362 = vpop.f32.mrf.mxu0
        %1363 = vmatprep.mubr.bf16.mxu0 0
        %1364 = vmatmul.mubr.bf16.gmra.mxu0 %v1310
        %v1365 = vpop.f32.mrf.mxu0
        %v1366 = vadd.f32 0.0, %v1365
        %v1367 = vpop.f32.mrf.mxu0
        %v1368 = vpop.f32.mrf.mxu0
        %v1369 = vadd.f32 0.0, %v1368
        %v1370 = vpop.f32.mrf.mxu0
        %1371 = vmatprep.mubr.bf16.mxu0 0
        %1372 = vmatmul.mubr.bf16.gmra.mxu0 %v1313
        %v1373 = vpop.f32.mrf.mxu0
        %v1374 = vadd.f32 0.0, %v1373
        %v1375 = vpop.f32.mrf.mxu0
        %v1376 = vpop.f32.mrf.mxu0
        %v1377 = vadd.f32 0.0, %v1376
        %v1378 = vpop.f32.mrf.mxu0
        %1379 = vdwg.mxu0
        %v1380 = vsel %vm304, %v1350, -inf
        %1381 = vmax.xlane.f32.xlu0 %v1380
        %v1382 = vpop.xlane.xlu0 %1381
        %v1383 = vsel %vm304, %v1353, -inf
        %1384 = vmax.xlane.f32.xlu0 %v1383
        %v1385 = vpop.xlane.xlu0 %1384
        %v1386 = vsel %vm304, %v1358, -inf
        %1387 = vmax.xlane.f32.xlu0 %v1386
        %v1388 = vpop.xlane.xlu0 %1387
        %v1389 = vsel %vm304, %v1361, -inf
        %1390 = vmax.xlane.f32.xlu0 %v1389
        %v1391 = vpop.xlane.xlu0 %1390
        %v1392 = vsel %vm304, %v1366, -inf
        %1393 = vmax.xlane.f32.xlu0 %v1392
        %v1394 = vpop.xlane.xlu0 %1393
        %v1395 = vsel %vm304, %v1369, -inf
        %1396 = vmax.xlane.f32.xlu0 %v1395
        %v1397 = vpop.xlane.xlu0 %1396
        %v1398 = vsel %vm304, %v1374, -inf
        %1399 = vmax.xlane.f32.xlu0 %v1398
        %v1400 = vpop.xlane.xlu0 %1399
        %v1401 = vsel %vm304, %v1377, -inf
        %1402 = vmax.xlane.f32.xlu0 %v1401
        %v1403 = vpop.xlane.xlu0 %1402
        %v1404 = vsub.f32 %v1350, %v1382
        %v1405 = vsub.f32 %v1353, %v1385
        %v1406 = vsub.f32 %v1358, %v1388
        %v1407 = vsub.f32 %v1361, %v1391
        %v1408 = vsub.f32 %v1366, %v1394
        %v1409 = vsub.f32 %v1369, %v1397
        %v1410 = vsub.f32 %v1374, %v1400
        %v1411 = vsub.f32 %v1377, %v1403
        %v1412 = vmul.f32 %v1404, 1.442695
        %v1413 = vpow.pop %v1412
        %v1414 = vmul.f32 %v1405, 1.442695
        %v1415 = vpow.pop %v1414
        %v1416 = vmul.f32 %v1406, 1.442695
        %v1417 = vpow.pop %v1416
        %v1418 = vmul.f32 %v1407, 1.442695
        %v1419 = vpow.pop %v1418
        %v1420 = vmul.f32 %v1408, 1.442695
        %v1421 = vpow.pop %v1420
        %v1422 = vmul.f32 %v1409, 1.442695
        %v1423 = vpow.pop %v1422
        %v1424 = vmul.f32 %v1410, 1.442695
        %v1425 = vpow.pop %v1424
        %v1426 = vmul.f32 %v1411, 1.442695
        %v1427 = vpow.pop %v1426
        %v1428 = vsel %vm304, %v1413, 0.0
        %1429 = vadd.xlane.f32.xlu0 %v1428
        %v1430 = vpop.xlane.xlu0 %1429
        %v1431 = vsel %vm304, %v1415, 0.0
        %1432 = vadd.xlane.f32.xlu0 %v1431
        %v1433 = vpop.xlane.xlu0 %1432
        %v1434 = vsel %vm304, %v1417, 0.0
        %1435 = vadd.xlane.f32.xlu0 %v1434
        %v1436 = vpop.xlane.xlu0 %1435
        %v1437 = vsel %vm304, %v1419, 0.0
        %1438 = vadd.xlane.f32.xlu0 %v1437
        %v1439 = vpop.xlane.xlu0 %1438
        %v1440 = vsel %vm304, %v1421, 0.0
        %1441 = vadd.xlane.f32.xlu0 %v1440
        %v1442 = vpop.xlane.xlu0 %1441
        %v1443 = vsel %vm304, %v1423, 0.0
        %1444 = vadd.xlane.f32.xlu0 %v1443
        %v1445 = vpop.xlane.xlu0 %1444
        %v1446 = vsel %vm304, %v1425, 0.0
        %1447 = vadd.xlane.f32.xlu0 %v1446
        %v1448 = vpop.xlane.xlu0 %1447
        %v1449 = vsel %vm304, %v1427, 0.0
        %1450 = vadd.xlane.f32.xlu0 %v1449
        %v1451 = vpop.xlane.xlu0 %1450
        %v1452 = vpack.c.bf16 %v1415, %v1413
        %v1453 = vpack.c.bf16 %v1419, %v1417
        %v1454 = vpack.c.bf16 %v1423, %v1421
        %v1455 = vpack.c.bf16 %v1427, %v1425
        %v1457 = vsel %vm304, %v1452, 0
        %v1460 = vsel %vm304, %v1453, 0
        %v1463 = vsel %vm304, %v1454, 0
        %v1466 = vsel %vm304, %v1455, 0
        %1468 = vmatprep.subr.bf16.mxu0 0
        %1469 = vmatpush1.bf16.msra.mxu0 0
        %1470 = vmatprep.subr.bf16.mxu0 0
        %1471 = vmatpush1.bf16.msra.mxu0 0
        %1472 = vmatprep.subr.bf16.mxu0 0
        %1473 = vmatpush1.bf16.msra.mxu0 0
        %1474 = vmatprep.subr.bf16.mxu0 0
        %1475 = vmatpush1.bf16.msra.mxu0 0
        %1476 = vmatprep.subr.bf16.mxu0 0
        %1477 = vmatpush1.bf16.msra.mxu0 %v685
        %1478 = vmatprep.subr.bf16.mxu0 0
        %1479 = vmatpush1.bf16.msra.mxu0 %v683
        %1480 = vmatprep.subr.bf16.mxu0 0
        %1481 = vmatpush1.bf16.msra.mxu0 %v681
        %1482 = vmatprep.subr.bf16.mxu0 0
        %1483 = vmatpush1.bf16.msra.mxu0 %v679
        %1484 = vmatprep.subr.bf16.mxu0 0
        %1485 = vmatpush2.bf16.msra.mxu0 0
        %1486 = vmatprep.subr.bf16.mxu0 0
        %1487 = vmatpush2.bf16.msra.mxu0 0
        %1488 = vmatprep.subr.bf16.mxu0 0
        %1489 = vmatpush2.bf16.msra.mxu0 0
        %1490 = vmatprep.subr.bf16.mxu0 0
        %1491 = vmatpush2.bf16.msra.mxu0 0
        %1492 = vmatprep.subr.bf16.mxu0 0
        %1493 = vmatpush2.bf16.msra.mxu0 0
        %1494 = vmatprep.subr.bf16.mxu0 0
        %1495 = vmatpush2.bf16.msra.mxu0 0
        %1496 = vmatprep.subr.bf16.mxu0 0
        %1497 = vmatpush2.bf16.msra.mxu0 0
        %1498 = vmatprep.subr.bf16.mxu0 0
        %1499 = vmatpush2.bf16.msra.mxu0 0
        %1500 = vmatprep.mubr.bf16.mxu0 0
        %1501 = vmatmul.mubr.bf16.gmra.mxu0 %v1457
        %v1502 = vpop.f32.mrf.mxu0
        %v1503 = vadd.f32 0.0, %v1502
        %v1504 = vpop.f32.mrf.mxu0
        %v1505 = vpop.f32.mrf.mxu0
        %v1506 = vadd.f32 0.0, %v1505
        %v1507 = vpop.f32.mrf.mxu0
        %1508 = vmatprep.mubr.bf16.mxu0 0
        %1509 = vmatmul.mubr.bf16.gmra.mxu0 %v1460
        %v1510 = vpop.f32.mrf.mxu0
        %v1511 = vadd.f32 0.0, %v1510
        %v1512 = vpop.f32.mrf.mxu0
        %v1513 = vpop.f32.mrf.mxu0
        %v1514 = vadd.f32 0.0, %v1513
        %v1515 = vpop.f32.mrf.mxu0
        %1516 = vmatprep.mubr.bf16.mxu0 0
        %1517 = vmatmul.mubr.bf16.gmra.mxu0 %v1463
        %v1518 = vpop.f32.mrf.mxu0
        %v1519 = vadd.f32 0.0, %v1518
        %v1520 = vpop.f32.mrf.mxu0
        %v1521 = vpop.f32.mrf.mxu0
        %v1522 = vadd.f32 0.0, %v1521
        %v1523 = vpop.f32.mrf.mxu0
        %1524 = vmatprep.mubr.bf16.mxu0 0
        %1525 = vmatmul.mubr.bf16.gmra.mxu0 %v1466
        %v1526 = vpop.f32.mrf.mxu0
        %v1527 = vadd.f32 0.0, %v1526
        %v1528 = vpop.f32.mrf.mxu0
        %v1529 = vpop.f32.mrf.mxu0
        %v1530 = vadd.f32 0.0, %v1529
        %v1531 = vpop.f32.mrf.mxu0
        %1532 = vdwg.mxu0
        %v1533 = vrcp.pop %v1430
        %v1534 = vrcp.pop %v1433
        %v1535 = vrcp.pop %v1436
        %v1536 = vrcp.pop %v1439
        %v1537 = vrcp.pop %v1442
        %v1538 = vrcp.pop %v1445
        %v1539 = vrcp.pop %v1448
        %v1540 = vrcp.pop %v1451
        %v1541 = vmul.f32 %v1503, %v1533
        %v1542 = vmul.f32 %v1506, %v1534
        %v1543 = vmul.f32 %v1511, %v1535
        %v1544 = vmul.f32 %v1514, %v1536
        %v1545 = vmul.f32 %v1519, %v1537
        %v1546 = vmul.f32 %v1522, %v1538
        %v1547 = vmul.f32 %v1527, %v1539
        %v1548 = vmul.f32 %v1530, %v1540
        %1557 = vrot.lane.b32.xlu0 %v1033, 8
        %v1558 = vpop.permute.xlu0 %1557
        %1559 = vrot.lane.b32.xlu0 %v1034, 8
        %v1560 = vpop.permute.xlu0 %1559
        %1561 = vrot.lane.b32.xlu0 %v1035, 8
        %v1562 = vpop.permute.xlu0 %1561
        %1563 = vrot.lane.b32.xlu0 %v1036, 8
        %v1564 = vpop.permute.xlu0 %1563
        %1565 = vrot.lane.b32.xlu0 %v1037, 8
        %v1566 = vpop.permute.xlu0 %1565
        %1567 = vrot.lane.b32.xlu0 %v1038, 8
        %v1568 = vpop.permute.xlu0 %1567
        %1569 = vrot.lane.b32.xlu0 %v1039, 8
        %v1570 = vpop.permute.xlu0 %1569
        %1571 = vrot.lane.b32.xlu0 %v1040, 8
        %v1572 = vpop.permute.xlu0 %1571
        %1589 = vrot.lane.b32.xlu0 %v1287, 16
        %v1590 = vpop.permute.xlu0 %1589
        %1591 = vrot.lane.b32.xlu0 %v1288, 16
        %v1592 = vpop.permute.xlu0 %1591
        %1593 = vrot.lane.b32.xlu0 %v1289, 16
        %v1594 = vpop.permute.xlu0 %1593
        %1595 = vrot.lane.b32.xlu0 %v1290, 16
        %v1596 = vpop.permute.xlu0 %1595
        %1597 = vrot.lane.b32.xlu0 %v1291, 16
        %v1598 = vpop.permute.xlu0 %1597
        %1599 = vrot.lane.b32.xlu0 %v1292, 16
        %v1600 = vpop.permute.xlu0 %1599
        %1601 = vrot.lane.b32.xlu0 %v1293, 16
        %v1602 = vpop.permute.xlu0 %1601
        %1603 = vrot.lane.b32.xlu0 %v1294, 16
        %v1604 = vpop.permute.xlu0 %1603
        %1621 = vrot.lane.b32.xlu0 %v1541, 24
        %v1622 = vpop.permute.xlu0 %1621
        %1623 = vrot.lane.b32.xlu0 %v1542, 24
        %v1624 = vpop.permute.xlu0 %1623
        %1625 = vrot.lane.b32.xlu0 %v1543, 24
        %v1626 = vpop.permute.xlu0 %1625
        %1627 = vrot.lane.b32.xlu0 %v1544, 24
        %v1628 = vpop.permute.xlu0 %1627
        %1629 = vrot.lane.b32.xlu0 %v1545, 24
        %v1630 = vpop.permute.xlu0 %1629
        %1631 = vrot.lane.b32.xlu0 %v1546, 24
        %v1632 = vpop.permute.xlu0 %1631
        %1633 = vrot.lane.b32.xlu0 %v1547, 24
        %v1634 = vpop.permute.xlu0 %1633
        %1635 = vrot.lane.b32.xlu0 %v1548, 24
        %v1636 = vpop.permute.xlu0 %1635
        %vm1645 = vcmask 64512
        %v1646 = vsel %vm1645, %v775, %v1558
        %v1647 = vsel %vm1645, %v776, %v1560
        %v1648 = vsel %vm1645, %v777, %v1562
        %v1649 = vsel %vm1645, %v778, %v1564
        %v1650 = vsel %vm1645, %v779, %v1566
        %v1651 = vsel %vm1645, %v780, %v1568
        %v1652 = vsel %vm1645, %v781, %v1570
        %v1653 = vsel %vm1645, %v782, %v1572
        %vm1654 = vcmask 130048
        %v1655 = vsel %vm1654, %v1646, %v1590
        %v1656 = vsel %vm1654, %v1647, %v1592
        %v1657 = vsel %vm1654, %v1648, %v1594
        %v1658 = vsel %vm1654, %v1649, %v1596
        %v1659 = vsel %vm1654, %v1650, %v1598
        %v1660 = vsel %vm1654, %v1651, %v1600
        %v1661 = vsel %vm1654, %v1652, %v1602
        %v1662 = vsel %vm1654, %v1653, %v1604
        %vm1663 = vcmask 195584
        %v1664 = vsel %vm1663, %v1655, %v1622
        %v1665 = vsel %vm1663, %v1656, %v1624
        %v1666 = vsel %vm1663, %v1657, %v1626
        %v1667 = vsel %vm1663, %v1658, %v1628
        %v1668 = vsel %vm1663, %v1659, %v1630
        %v1669 = vsel %vm1663, %v1660, %v1632
        %v1670 = vsel %vm1663, %v1661, %v1634
        %v1671 = vsel %vm1663, %v1662, %v1636
        %v1672 = vpack.c.bf16 %v1665, %v1664
        %v1673 = vpack.c.bf16 %v1667, %v1666
        %v1674 = vpack.c.bf16 %v1669, %v1668
        %v1675 = vpack.c.bf16 %v1671, %v1670
        %v1680 = vunpack.c.l.b16 %v382
        %v1681 = vunpack.c.l.b16 %v383
        %v1682 = vunpack.c.l.b16 %v384
        %v1683 = vunpack.c.l.b16 %v385
        %v1684 = vpack.c.b16 %v1681, %v1680
        %v1685 = vpack.c.b16 %v1683, %v1682
        %vm1688 = vcmask 261120
        %v1690 = vsel %vm1688, %v1672, 0
        %v1693 = vsel %vm1688, %v1673, 0
        %v1696 = vsel %vm1688, %v1674, 0
        %v1699 = vsel %vm1688, %v1675, 0
        %1701 = vmatprep.subr.bf16.mxu0 0
        %1702 = vmatpush1.bf16.msra.mxu0 0
        %1703 = vmatprep.subr.bf16.mxu0 0
        %1704 = vmatpush1.bf16.msra.mxu0 0
        %1705 = vmatprep.subr.bf16.mxu0 0
        %1706 = vmatpush1.bf16.msra.mxu0 0
        %1707 = vmatprep.subr.bf16.mxu0 0
        %1708 = vmatpush1.bf16.msra.mxu0 0
        %1709 = vmatprep.subr.bf16.mxu0 0
        %1710 = vmatpush1.bf16.msra.mxu0 0
        %1711 = vmatprep.subr.bf16.mxu0 0
        %1712 = vmatpush1.bf16.msra.mxu0 0
        %1713 = vmatprep.subr.bf16.mxu0 0
        %1714 = vmatpush1.bf16.msra.mxu0 %v1685
        %1715 = vmatprep.subr.bf16.mxu0 0
        %1716 = vmatpush1.bf16.msra.mxu0 %v1684
        %1717 = vmatprep.subr.bf16.mxu0 0
        %1718 = vmatpush2.bf16.msra.mxu0 0
        %1719 = vmatprep.subr.bf16.mxu0 0
        %1720 = vmatpush2.bf16.msra.mxu0 0
        %1721 = vmatprep.subr.bf16.mxu0 0
        %1722 = vmatpush2.bf16.msra.mxu0 0
        %1723 = vmatprep.subr.bf16.mxu0 0
        %1724 = vmatpush2.bf16.msra.mxu0 0
        %1725 = vmatprep.subr.bf16.mxu0 0
        %1726 = vmatpush2.bf16.msra.mxu0 0
        %1727 = vmatprep.subr.bf16.mxu0 0
        %1728 = vmatpush2.bf16.msra.mxu0 0
        %1729 = vmatprep.subr.bf16.mxu0 0
        %1730 = vmatpush2.bf16.msra.mxu0 0
        %1731 = vmatprep.subr.bf16.mxu0 0
        %1732 = vmatpush2.bf16.msra.mxu0 0
        %1733 = vmatprep.mubr.bf16.mxu0 0
        %1734 = vmatmul.mubr.bf16.gmra.mxu0 %v1690
        %v1735 = vpop.f32.mrf.mxu0
        %v1736 = vadd.f32 0.0, %v1735
        %v1737 = vpop.f32.mrf.mxu0
        %v1738 = vpop.f32.mrf.mxu0
        %v1739 = vadd.f32 0.0, %v1738
        %v1740 = vpop.f32.mrf.mxu0
        %1741 = vmatprep.mubr.bf16.mxu0 0
        %1742 = vmatmul.mubr.bf16.gmra.mxu0 %v1693
        %v1743 = vpop.f32.mrf.mxu0
        %v1744 = vadd.f32 0.0, %v1743
        %v1745 = vpop.f32.mrf.mxu0
        %v1746 = vpop.f32.mrf.mxu0
        %v1747 = vadd.f32 0.0, %v1746
        %v1748 = vpop.f32.mrf.mxu0
        %1749 = vmatprep.mubr.bf16.mxu0 0
        %1750 = vmatmul.mubr.bf16.gmra.mxu0 %v1696
        %v1751 = vpop.f32.mrf.mxu0
        %v1752 = vadd.f32 0.0, %v1751
        %v1753 = vpop.f32.mrf.mxu0
        %v1754 = vpop.f32.mrf.mxu0
        %v1755 = vadd.f32 0.0, %v1754
        %v1756 = vpop.f32.mrf.mxu0
        %1757 = vmatprep.mubr.bf16.mxu0 0
        %1758 = vmatmul.mubr.bf16.gmra.mxu0 %v1699
        %v1759 = vpop.f32.mrf.mxu0
        %v1760 = vadd.f32 0.0, %v1759
        %v1761 = vpop.f32.mrf.mxu0
        %v1762 = vpop.f32.mrf.mxu0
        %v1763 = vadd.f32 0.0, %v1762
        %v1764 = vpop.f32.mrf.mxu0
        %1765 = vdwg.mxu0
        %v1766 = vunpack.c.l.bf16 %v244
        %v1767 = vunpack.c.l.bf16 %v245
        %v1768 = vunpack.c.l.bf16 %v246
        %v1769 = vunpack.c.l.bf16 %v247
        %v1770 = vunpack.c.l.bf16 %v248
        %v1771 = vunpack.c.l.bf16 %v249
        %v1772 = vunpack.c.l.bf16 %v250
        %v1773 = vunpack.c.l.bf16 %v251
        %v1775 = vlaneseq
        %v1776 = vshrl.u32 %v1775, 7
        %v1777 = vsub.s32 0, %v1776
        %v1778 = vrot.slane %v386, %v1777
        %v1780 = vmul.f32 %v1778, %v1766
        %v1781 = vmul.f32 %v1778, %v1767
        %v1782 = vmul.f32 %v1778, %v1768
        %v1783 = vmul.f32 %v1778, %v1769
        %v1784 = vmul.f32 %v1778, %v1770
        %v1785 = vmul.f32 %v1778, %v1771
        %v1786 = vmul.f32 %v1778, %v1772
        %v1787 = vmul.f32 %v1778, %v1773
        %v1788 = vadd.f32 %v1780, %v1736
        %v1789 = vadd.f32 %v1781, %v1739
        %v1790 = vadd.f32 %v1782, %v1744
        %v1791 = vadd.f32 %v1783, %v1747
        %v1792 = vadd.f32 %v1784, %v1752
        %v1793 = vadd.f32 %v1785, %v1755
        %v1794 = vadd.f32 %v1786, %v1760
        %v1795 = vadd.f32 %v1787, %v1763
        %v1797 = vlaneseq
        %v1798 = vshrl.u32 %v1797, 7
        %v1799 = vsub.s32 0, %v1798
        %v1800 = vrot.slane %v387, %v1799
        %v1802 = vadd.f32 %v1788, %v1800
        %v1803 = vadd.f32 %v1789, %v1800
        %v1804 = vadd.f32 %v1790, %v1800
        %v1805 = vadd.f32 %v1791, %v1800
        %v1806 = vadd.f32 %v1792, %v1800
        %v1807 = vadd.f32 %v1793, %v1800
        %v1808 = vadd.f32 %v1794, %v1800
        %v1809 = vadd.f32 %v1795, %v1800
        %1810 = vst.msk [vmem:[%s242] sm:$0xff] %vm304, %v1802
        %1811 = vst.msk [vmem:[%s242 + $0x8] sm:$0xff] %vm304, %v1803
        %1812 = vst.msk [vmem:[%s242 + $0x10] sm:$0xff] %vm304, %v1804
        %1813 = vst.msk [vmem:[%s242 + $0x18] sm:$0xff] %vm304, %v1805
        %1814 = vst.msk [vmem:[%s242 + $0x20] sm:$0xff] %vm304, %v1806
        %1815 = vst.msk [vmem:[%s242 + $0x28] sm:$0xff] %vm304, %v1807
        %1816 = vst.msk [vmem:[%s242 + $0x30] sm:$0xff] %vm304, %v1808
        %1817 = vst.msk [vmem:[%s242 + $0x38] sm:$0xff] %vm304, %v1809
        %s1818 = sand.u32 %s140, 1
        %s1819 = scalar_lea.sflag [#allocation4], %s1818
        %s1820 = sand.u32 %s140, 1
        %s1821 = smul.addr %s1820, 64
        %s1822 = scalar_lea.vmem [#allocation5], %s1821
        // Predicated region
        $region45: #{tpu_custom_call.1} parent=39 // pred_check
          %p1823 = pneg %p150
        $region46: #{tpu_custom_call.1} parent=39 // pred_check_branch
          %1825 = sbr.rel (%p1823) target = $region48
        $region47: #{tpu_custom_call.1} parent=39 // pred_region
          %s1827 = ssub.s32 1024, 1024
          %1828 = vsyncadd %s1819, %s1827
          %s1829 = smul.addr %s22, 8
          %s1830 = smul.addr %s1829, 128
          %s1831 = scalar_lea.hbm %s5, %s1830
          %s1832 = sshll.u32 %s1822, 4
          %s1833 = int_to_ptr.vmem [resolvable:$true] %s1832
          %1838 = dma.vmem_to_hbm [thread:$0]  %s1833, 1024, %s1831, %s1819, 128, 128, 8
        $region48: #{tpu_custom_call.1} parent=39 // pred_fallthru
          _
      $region40: #{tpu_custom_call.1} parent=5 // pred_fallthru
        _
      %p1839 = scmp.le.s32.totalorder 2, %s17
      // Predicated region
      $region49: #{tpu_custom_call.1} parent=5 // pred_check
        %p1840 = pneg %p1839
      $region50: #{tpu_custom_call.1} parent=5 // pred_check_branch
        %1842 = sbr.rel (%p1840) target = $region52
      $region51: #{tpu_custom_call.1} parent=5 // pred_region
        %s1843 = ssub.s32 %s17, 2
        // Predicated region
        $region53: #{tpu_custom_call.1} parent=51 // pred_check
          %p1844 = pneg %p156
        $region54: #{tpu_custom_call.1} parent=51 // pred_check_branch
          %1846 = sbr.rel (%p1844) target = $region56
        $region55: #{tpu_custom_call.1} parent=51 // pred_region
          %s1847 = sand.u32 %s141, 1
          %s1848 = scalar_lea.sflag [#allocation4], %s1847
          %s1849 = sand.u32 %s141, 1
          %s1850 = smul.addr %s1849, 64
          %s1851 = scalar_lea.vmem [#allocation5], %s1850
          %1852 = dma.done %s1848, 1024
        $region56: #{tpu_custom_call.1} parent=51 // pred_fallthru
          _
      $region52: #{tpu_custom_call.1} parent=5 // pred_fallthru
        _
    $region6: #{tpu_custom_call.1} parent=1 // loop_footer
      %s21 = sadd.s32 1, %s17
    $region7: #{tpu_custom_call.1} parent=1 // loop_footer_branch
      %16 = sbr.rel target = $region3
    $region8: #{tpu_custom_call.1} parent=1 // loop_exit
      _
    %1853 = vsyncpa [#allocation3], 1
    %s1854 = scalar_lea.sflag [#allocation3], 1
    %1855 = vsyncpa %s1854, 1
    %1856 = vsyncpa [#allocation4], 1
    %s1857 = scalar_lea.sflag [#allocation4], 1
    %1858 = vsyncpa %s1857, 1

</llo_original>
